<compile_context>
chip_gen: v7x
topology: tpu7x:2x2x1
jax: 0.10.0
libtpu: 0.0.40
codegen_flags: <defaults>
</compile_context>

<pallas_src>
import functools

import jax
import jax.numpy as jnp
from jax.experimental import pallas as pl
from jax.experimental.pallas import tpu as pltpu


def _round_up(x, m):
    return ((x + m - 1) // m) * m


# --------------------------------------------------------------------------- #
# Kernel
# --------------------------------------------------------------------------- #
def qnet_kernel(x_ref, w1_ref, b1_ref, w2_ref, b2_ref, out_ref, *,
                fc1_on_vpu, mxu_dtype):
    """One batch tile: out = relu(x @ W1 + b1) @ W2 + b2.

    Weights / biases arrive pre-cast and pre-reshaped (no per-step casts).
    """
    if fc1_on_vpu:
        # Tiny contraction (state_dim <= 16): S VPU multiply-adds; skips the
        # MXU push/pop for a pass that would be ~2-3% utilized.
        x = x_ref[...].astype(jnp.float32)             # (TB, S)
        w1 = w1_ref[...]                               # (S, H) f32
        h = b1_ref[...]                                # (1, H) f32, broadcasts
        for k in range(x.shape[1]):                    # S is static -> unrolled
            h = h + x[:, k:k + 1] * w1[k:k + 1, :]
        h = jnp.maximum(h, 0.0)
    else:
        # fc1 on the MXU with f32 accumulation; bias + ReLU stay f32 on the VPU
        # (free filler under the MXU; avoids bf16-elementwise emulation on v5e).
        h = jnp.dot(x_ref[...].astype(mxu_dtype), w1_ref[...],
                    preferred_element_type=jnp.float32)
        h = jnp.maximum(h + b1_ref[...], 0.0)

    # fc2 (K = hidden_dim) is the only real MXU work.
    y = jnp.dot(h.astype(mxu_dtype), w2_ref[...],
                preferred_element_type=jnp.float32)
    out_ref[...] = (y + b2_ref[...]).astype(out_ref.dtype)


# --------------------------------------------------------------------------- #
# Parameter preparation (run ONCE per weight update, not per forward call)
# --------------------------------------------------------------------------- #
def prepare_qnet_params(w1, b1, w2, b2, *, compute_dtype=jnp.float32,
                        fc1_on_vpu=None):
    """Hoist all loop-/call-invariant weight work out of the kernel and wrapper.

    compute_dtype: set jnp.bfloat16 on v6e/v7x (MXU operands bf16, accumulation
                   stays f32).  NOTE: do NOT plan int8 weights — v7x MXU has no
                   int path (fp8 only).
    """
    S, H = w1.shape
    A = w2.shape[1]
    if fc1_on_vpu is None:
        fc1_on_vpu = S <= 16          # tiny contraction -> VPU FMAs for fc1
    compute_dtype = jnp.dtype(compute_dtype)
    return dict(
        # fc1-on-VPU keeps W1 in f32 (no bf16 VPU on v5e); otherwise pre-cast.
        w1=jnp.asarray(w1, jnp.float32 if fc1_on_vpu else compute_dtype),
        b1=jnp.asarray(b1, jnp.float32).reshape(1, H),
        w2=jnp.asarray(w2, compute_dtype),
        b2=jnp.asarray(b2, jnp.float32).reshape(1, A),
        fc1_on_vpu=fc1_on_vpu,
        compute_dtype=compute_dtype,
    )


# --------------------------------------------------------------------------- #
# Forward wrapper
# --------------------------------------------------------------------------- #
def _select_batch_tile(B, S, A, x_itemsize, *, tile_budget_bytes=8 << 20,
                       mxu_m=256, min_steps=8):
    """Single grid step for small/medium batches; tile only when B is large,
    with TB a multiple of the MXU height and >= min_steps steps (>= 4 per TC
    on v7x megacore)."""
    B8 = _round_up(B, 8)
    per_row = 2 * (S * x_itemsize + A * 4)             # double-buffered x + out
    if B8 * per_row <= tile_budget_bytes:
        return B8                                      # grid = (1,)
    tb = _round_up(pl.cdiv(B8, min_steps), mxu_m)
    tb = max(mxu_m, min(tb, _round_up(max(tile_budget_bytes // per_row, 1), mxu_m)))
    return tb


def qnet_forward(x, params, *, block_b=None):
    """x: (B, S) -> (B, A), using params from prepare_qnet_params()."""
    w1, b1, w2, b2 = params["w1"], params["b1"], params["w2"], params["b2"]
    fc1_on_vpu = params["fc1_on_vpu"]
    mxu_dtype = params["compute_dtype"]

    B, S = x.shape
    H = w1.shape[1]
    A = w2.shape[1]

    if block_b is None:
        TB = _select_batch_tile(B, S, A, x.dtype.itemsize)
    else:
        TB = _round_up(min(block_b, _round_up(B, 8)), 8)
    B_pad = _round_up(B, TB)
    x_p = x if B_pad == B else jnp.pad(x, ((0, B_pad - B), (0, 0)))
    grid = (B_pad // TB,)

    kernel = functools.partial(qnet_kernel, fc1_on_vpu=fc1_on_vpu,
                               mxu_dtype=mxu_dtype)

    def vmem_need(weight_bufs):
        w_bytes = (w1.size * w1.dtype.itemsize + w2.size * w2.dtype.itemsize
                   + b1.size * 4 + b2.size * 4)
        stream = 2 * TB * (S * x.dtype.itemsize + A * 4)   # double-buffered x/out
        return weight_bufs * w_bytes + stream

    def run(single_buffered_weights):
        def resident(shape):
            # Constant index_map -> stays VMEM-resident across the batch grid;
            # Buffered(1) drops the default pipeline's useless second buffer.
            if single_buffered_weights:
                return pl.BlockSpec(shape, lambda i: (0, 0),
                                    pipeline_mode=pl.Buffered(1))
            return pl.BlockSpec(shape, lambda i: (0, 0))

        # Only raise the scoped-VMEM limit when actually needed; keep headroom
        # below v7x's 64 MiB physical VMEM.
        need = vmem_need(1 if single_buffered_weights else 2)
        vmem_limit = min(int(need * 2), 48 << 20) if need > (24 << 20) else None
        # TODO(synk): if S*H weights alone exceed ~24 MiB (bf16), add a K-tiled
        # "arbitrary" grid axis over S with an f32 VMEM accumulator for fc1
        # instead of keeping W1 fully resident (required on v7x's 64 MiB VMEM).

        return pl.pallas_call(
            kernel,
            out_shape=jax.ShapeDtypeStruct((B_pad, A), jnp.float32),
            grid=grid,
            in_specs=[
                # x streams over the batch grid axis (double-buffered).
                pl.BlockSpec((TB, S), lambda i: (i, 0)),
                resident((S, H)),
                resident((1, H)),
                resident((H, A)),
                resident((1, A)),
            ],
            # Unpadded (TB, A) output block: A equals the full array dim, so the
            # spec is legal; the masked 2-lane store beats 64x padded writeback.
            out_specs=pl.BlockSpec((TB, A), lambda i: (i, 0)),
            compiler_params=pltpu.CompilerParams(
                dimension_semantics=("parallel",),   # megacore / 2 TCs on v7x
                vmem_limit_bytes=vmem_limit,
            ),
        )(x_p, w1, b1, w2, b2)

    single_buf = hasattr(pl, "Buffered")
    try:
        out = run(single_buf)
    except Exception:  # pipeline_mode=Buffered(1) unsupported -> default pipeline
        if not single_buf:
            raise
        out = run(False)

    return out if B_pad == B else out[:B]


def init_qnet_params(key, state_dim, hidden_dim, action_dim):
    """Deterministic init mimicking torch.nn.Linear default (U[-1/sqrt(fan_in), +])."""
    k1, k2, k3, k4 = jax.random.split(key, 4)
    bound1 = 1.0 / jnp.sqrt(state_dim)
    bound2 = 1.0 / jnp.sqrt(hidden_dim)
    # Stored as (in, out): equivalent to PyTorch's (out, in) weight transposed.
    w1 = jax.random.uniform(k1, (state_dim, hidden_dim), jnp.float32, -bound1, bound1)
    b1 = jax.random.uniform(k2, (hidden_dim,), jnp.float32, -bound1, bound1)
    w2 = jax.random.uniform(k3, (hidden_dim, action_dim), jnp.float32, -bound2, bound2)
    b2 = jax.random.uniform(k4, (action_dim,), jnp.float32, -bound2, bound2)
    return w1, b1, w2, b2


if __name__ == "__main__":
    # DQN-style shapes: a replay minibatch of CartPole-like states.
    batch, state_dim, hidden_dim, action_dim = 256, 4, 128, 2

    key = jax.random.PRNGKey(0)
    kx, kp = jax.random.split(key)
    x = jax.random.normal(kx, (batch, state_dim), jnp.float32)
    w1, b1, w2, b2 = init_qnet_params(kp, state_dim, hidden_dim, action_dim)

    ref = jnp.maximum(x @ w1 + b1, 0.0) @ w2 + b2

    # f32 path (exact): single grid step for the whole replay batch.
    params_f32 = prepare_qnet_params(w1, b1, w2, b2, compute_dtype=jnp.float32)
    out = jax.block_until_ready(qnet_forward(x, params_f32))
    assert out.shape == (batch, action_dim)
    assert jnp.allclose(out, ref, atol=1e-5, rtol=1e-5), (
        float(jnp.max(jnp.abs(out - ref))))

    # Explicit batch-tiled path (grid=(2,), "parallel" batch axis).
    out_tiled = jax.block_until_ready(qnet_forward(x, params_f32, block_b=128))
    assert jnp.allclose(out_tiled, ref, atol=1e-5, rtol=1e-5)

    # Odd tiny batch (exercises the 8-row batch padding + strip).
    out_small = jax.block_until_ready(qnet_forward(x[:3], params_f32))
    assert jnp.allclose(out_small, ref[:3], atol=1e-5, rtol=1e-5)

    # bf16-operand path (recommended default on v6e/v7x); expected bf16
    # precision loss -> looser tolerance, not a kernel bug.
    params_bf16 = prepare_qnet_params(w1, b1, w2, b2, compute_dtype=jnp.bfloat16)
    out_bf16 = jax.block_until_ready(qnet_forward(x, params_bf16))
    assert jnp.allclose(out_bf16, ref, atol=5e-2, rtol=5e-2)

    print("KERNEL_OK")
</pallas_src>

<mosaic_0001>
module attributes {stable_mosaic.version = 11 : i64} {
  func.func @qnet_kernel(%arg0: i32, %arg1: memref<256x4xf32, #tpu.memory_space<vmem>>, %arg2: memref<4x128xf32, #tpu.memory_space<vmem>>, %arg3: memref<1x128xf32, #tpu.memory_space<vmem>>, %arg4: memref<128x2xf32, #tpu.memory_space<vmem>>, %arg5: memref<1x2xf32, #tpu.memory_space<vmem>>, %arg6: memref<256x2xf32, #tpu.memory_space<vmem>>) attributes {dimension_semantics = [#tpu.dimension_semantics<parallel>], iteration_bounds = array<i64: 1>, scalar_prefetch = 0 : i64, scratch_operands = 0 : i64, tpu.core_type = #tpu.core_type<tc>, window_params = [{transform_indices = @transform_0, window_bounds = array<i64: 256, 4>}, {pipeline_mode = #tpu.pipeline_mode<synchronous>, transform_indices = @transform_1, window_bounds = array<i64: 4, 128>}, {pipeline_mode = #tpu.pipeline_mode<synchronous>, transform_indices = @transform_2, window_bounds = array<i64: 1, 128>}, {pipeline_mode = #tpu.pipeline_mode<synchronous>, transform_indices = @transform_3, window_bounds = array<i64: 128, 2>}, {pipeline_mode = #tpu.pipeline_mode<synchronous>, transform_indices = @transform_4, window_bounds = array<i64: 1, 2>}, {transform_indices = @transform_5, window_bounds = array<i64: 256, 2>}]} {
    %c0 = arith.constant 0 : index
    %c0_0 = arith.constant 0 : index
    %0 = vector.load %arg1[%c0, %c0_0] : memref<256x4xf32, #tpu.memory_space<vmem>>, vector<256x4xf32>
    %c0_1 = arith.constant 0 : index
    %c0_2 = arith.constant 0 : index
    %1 = vector.load %arg2[%c0_1, %c0_2] : memref<4x128xf32, #tpu.memory_space<vmem>>, vector<4x128xf32>
    %c0_3 = arith.constant 0 : index
    %c0_4 = arith.constant 0 : index
    %2 = vector.load %arg3[%c0_3, %c0_4] : memref<1x128xf32, #tpu.memory_space<vmem>>, vector<1x128xf32>
    %3 = vector.extract_strided_slice %0 {offsets = [0, 0], sizes = [256, 1], strides = [1, 1]} : vector<256x4xf32> to vector<256x1xf32>
    %4 = vector.extract_strided_slice %1 {offsets = [0, 0], sizes = [1, 128], strides = [1, 1]} : vector<4x128xf32> to vector<1x128xf32>
    %5 = vector.broadcast %3 : vector<256x1xf32> to vector<256x128xf32>
    %6 = vector.broadcast %4 : vector<1x128xf32> to vector<256x128xf32>
    %7 = arith.mulf %5, %6 : vector<256x128xf32>
    %8 = vector.broadcast %2 : vector<1x128xf32> to vector<256x128xf32>
    %9 = arith.addf %8, %7 : vector<256x128xf32>
    %10 = vector.extract_strided_slice %0 {offsets = [0, 1], sizes = [256, 1], strides = [1, 1]} : vector<256x4xf32> to vector<256x1xf32>
    %11 = vector.extract_strided_slice %1 {offsets = [1, 0], sizes = [1, 128], strides = [1, 1]} : vector<4x128xf32> to vector<1x128xf32>
    %12 = vector.broadcast %10 : vector<256x1xf32> to vector<256x128xf32>
    %13 = vector.broadcast %11 : vector<1x128xf32> to vector<256x128xf32>
    %14 = arith.mulf %12, %13 : vector<256x128xf32>
    %15 = arith.addf %9, %14 : vector<256x128xf32>
    %16 = vector.extract_strided_slice %0 {offsets = [0, 2], sizes = [256, 1], strides = [1, 1]} : vector<256x4xf32> to vector<256x1xf32>
    %17 = vector.extract_strided_slice %1 {offsets = [2, 0], sizes = [1, 128], strides = [1, 1]} : vector<4x128xf32> to vector<1x128xf32>
    %18 = vector.broadcast %16 : vector<256x1xf32> to vector<256x128xf32>
    %19 = vector.broadcast %17 : vector<1x128xf32> to vector<256x128xf32>
    %20 = arith.mulf %18, %19 : vector<256x128xf32>
    %21 = arith.addf %15, %20 : vector<256x128xf32>
    %22 = vector.extract_strided_slice %0 {offsets = [0, 3], sizes = [256, 1], strides = [1, 1]} : vector<256x4xf32> to vector<256x1xf32>
    %23 = vector.extract_strided_slice %1 {offsets = [3, 0], sizes = [1, 128], strides = [1, 1]} : vector<4x128xf32> to vector<1x128xf32>
    %24 = vector.broadcast %22 : vector<256x1xf32> to vector<256x128xf32>
    %25 = vector.broadcast %23 : vector<1x128xf32> to vector<256x128xf32>
    %26 = arith.mulf %24, %25 : vector<256x128xf32>
    %27 = arith.addf %21, %26 : vector<256x128xf32>
    %cst = arith.constant 0.000000e+00 : f32
    %28 = vector.broadcast %cst : f32 to vector<256x128xf32>
    %29 = arith.maximumf %27, %28 : vector<256x128xf32>
    %c0_5 = arith.constant 0 : index
    %c0_6 = arith.constant 0 : index
    %30 = vector.load %arg4[%c0_5, %c0_6] : memref<128x2xf32, #tpu.memory_space<vmem>>, vector<128x2xf32>
    %cst_7 = arith.constant dense<0.000000e+00> : vector<256x2xf32>
    %31 = tpu.matmul %29, %30, %cst_7 {dimension_numbers = #tpu.dot_dimension_numbers<[1], [0], [0], [1], [0, 0, 1, 1], [], []>} : vector<256x128xf32>, vector<128x2xf32>, vector<256x2xf32> -> vector<256x2xf32>
    %c0_8 = arith.constant 0 : index
    %c0_9 = arith.constant 0 : index
    %32 = vector.load %arg5[%c0_8, %c0_9] : memref<1x2xf32, #tpu.memory_space<vmem>>, vector<1x2xf32>
    %33 = vector.broadcast %32 : vector<1x2xf32> to vector<256x2xf32>
    %34 = arith.addf %31, %33 : vector<256x2xf32>
    %c0_10 = arith.constant 0 : index
    %c0_11 = arith.constant 0 : index
    %35 = vector.load %arg6[%c0_10, %c0_11] : memref<256x2xf32, #tpu.memory_space<vmem>>, vector<256x2xf32>
    tpu.vector_store %arg6[%c0_10, %c0_11], %34 {strides = array<i32>} : memref<256x2xf32, #tpu.memory_space<vmem>>, vector<256x2xf32>,
    return
  }
  func.func @transform_0(%arg0: i32) -> (i32, i32) {
    %c0_i32 = arith.constant 0 : i32
    %c0_i32_0 = arith.constant 0 : i32
    return %arg0, %c0_i32 : i32, i32
  }
  func.func @transform_1(%arg0: i32) -> (i32, i32) {
    %c0_i32 = arith.constant 0 : i32
    %c0_i32_0 = arith.constant 0 : i32
    %c0_i32_1 = arith.constant 0 : i32
    return %c0_i32, %c0_i32_0 : i32, i32
  }
  func.func @transform_2(%arg0: i32) -> (i32, i32) {
    %c0_i32 = arith.constant 0 : i32
    %c0_i32_0 = arith.constant 0 : i32
    %c0_i32_1 = arith.constant 0 : i32
    return %c0_i32, %c0_i32_0 : i32, i32
  }
  func.func @transform_3(%arg0: i32) -> (i32, i32) {
    %c0_i32 = arith.constant 0 : i32
    %c0_i32_0 = arith.constant 0 : i32
    %c0_i32_1 = arith.constant 0 : i32
    return %c0_i32, %c0_i32_0 : i32, i32
  }
  func.func @transform_4(%arg0: i32) -> (i32, i32) {
    %c0_i32 = arith.constant 0 : i32
    %c0_i32_0 = arith.constant 0 : i32
    %c0_i32_1 = arith.constant 0 : i32
    return %c0_i32, %c0_i32_0 : i32, i32
  }
  func.func @transform_5(%arg0: i32) -> (i32, i32) {
    %c0_i32 = arith.constant 0 : i32
    %c0_i32_0 = arith.constant 0 : i32
    return %arg0, %c0_i32 : i32, i32
  }
}

module attributes {stable_mosaic.version = 11 : i64} {
  func.func @qnet_kernel(%arg0: i32, %arg1: memref<256x4xf32, #tpu.memory_space<vmem>>, %arg2: memref<4x128xf32, #tpu.memory_space<vmem>>, %arg3: memref<1x128xf32, #tpu.memory_space<vmem>>, %arg4: memref<128x2xf32, #tpu.memory_space<vmem>>, %arg5: memref<1x2xf32, #tpu.memory_space<vmem>>, %arg6: memref<256x2xf32, #tpu.memory_space<vmem>>) attributes {dimension_semantics = [#tpu.dimension_semantics<parallel>], iteration_bounds = array<i64: 1>, scalar_prefetch = 0 : i64, scratch_operands = 0 : i64, tpu.core_type = #tpu.core_type<tc>, window_params = [{transform_indices = @transform_0, window_bounds = array<i64: 256, 4>}, {pipeline_mode = #tpu.pipeline_mode<synchronous>, transform_indices = @transform_1, window_bounds = array<i64: 4, 128>}, {pipeline_mode = #tpu.pipeline_mode<synchronous>, transform_indices = @transform_2, window_bounds = array<i64: 1, 128>}, {pipeline_mode = #tpu.pipeline_mode<synchronous>, transform_indices = @transform_3, window_bounds = array<i64: 128, 2>}, {pipeline_mode = #tpu.pipeline_mode<synchronous>, transform_indices = @transform_4, window_bounds = array<i64: 1, 2>}, {transform_indices = @transform_5, window_bounds = array<i64: 256, 2>}]} {
    %c0 = arith.constant 0 : index
    %c0_0 = arith.constant 0 : index
    %0 = vector.load %arg1[%c0, %c0_0] : memref<256x4xf32, #tpu.memory_space<vmem>>, vector<256x4xf32>
    %c0_1 = arith.constant 0 : index
    %c0_2 = arith.constant 0 : index
    %1 = vector.load %arg2[%c0_1, %c0_2] : memref<4x128xf32, #tpu.memory_space<vmem>>, vector<4x128xf32>
    %c0_3 = arith.constant 0 : index
    %c0_4 = arith.constant 0 : index
    %2 = vector.load %arg3[%c0_3, %c0_4] : memref<1x128xf32, #tpu.memory_space<vmem>>, vector<1x128xf32>
    %3 = vector.extract_strided_slice %0 {offsets = [0, 0], sizes = [256, 1], strides = [1, 1]} : vector<256x4xf32> to vector<256x1xf32>
    %4 = vector.extract_strided_slice %1 {offsets = [0, 0], sizes = [1, 128], strides = [1, 1]} : vector<4x128xf32> to vector<1x128xf32>
    %5 = vector.broadcast %3 : vector<256x1xf32> to vector<256x128xf32>
    %6 = vector.broadcast %4 : vector<1x128xf32> to vector<256x128xf32>
    %7 = arith.mulf %5, %6 : vector<256x128xf32>
    %8 = vector.broadcast %2 : vector<1x128xf32> to vector<256x128xf32>
    %9 = arith.addf %8, %7 : vector<256x128xf32>
    %10 = vector.extract_strided_slice %0 {offsets = [0, 1], sizes = [256, 1], strides = [1, 1]} : vector<256x4xf32> to vector<256x1xf32>
    %11 = vector.extract_strided_slice %1 {offsets = [1, 0], sizes = [1, 128], strides = [1, 1]} : vector<4x128xf32> to vector<1x128xf32>
    %12 = vector.broadcast %10 : vector<256x1xf32> to vector<256x128xf32>
    %13 = vector.broadcast %11 : vector<1x128xf32> to vector<256x128xf32>
    %14 = arith.mulf %12, %13 : vector<256x128xf32>
    %15 = arith.addf %9, %14 : vector<256x128xf32>
    %16 = vector.extract_strided_slice %0 {offsets = [0, 2], sizes = [256, 1], strides = [1, 1]} : vector<256x4xf32> to vector<256x1xf32>
    %17 = vector.extract_strided_slice %1 {offsets = [2, 0], sizes = [1, 128], strides = [1, 1]} : vector<4x128xf32> to vector<1x128xf32>
    %18 = vector.broadcast %16 : vector<256x1xf32> to vector<256x128xf32>
    %19 = vector.broadcast %17 : vector<1x128xf32> to vector<256x128xf32>
    %20 = arith.mulf %18, %19 : vector<256x128xf32>
    %21 = arith.addf %15, %20 : vector<256x128xf32>
    %22 = vector.extract_strided_slice %0 {offsets = [0, 3], sizes = [256, 1], strides = [1, 1]} : vector<256x4xf32> to vector<256x1xf32>
    %23 = vector.extract_strided_slice %1 {offsets = [3, 0], sizes = [1, 128], strides = [1, 1]} : vector<4x128xf32> to vector<1x128xf32>
    %24 = vector.broadcast %22 : vector<256x1xf32> to vector<256x128xf32>
    %25 = vector.broadcast %23 : vector<1x128xf32> to vector<256x128xf32>
    %26 = arith.mulf %24, %25 : vector<256x128xf32>
    %27 = arith.addf %21, %26 : vector<256x128xf32>
    %cst = arith.constant 0.000000e+00 : f32
    %28 = vector.broadcast %cst : f32 to vector<256x128xf32>
    %29 = arith.maximumf %27, %28 : vector<256x128xf32>
    %c0_5 = arith.constant 0 : index
    %c0_6 = arith.constant 0 : index
    %30 = vector.load %arg4[%c0_5, %c0_6] : memref<128x2xf32, #tpu.memory_space<vmem>>, vector<128x2xf32>
    %cst_7 = arith.constant dense<0.000000e+00> : vector<256x2xf32>
    %31 = tpu.matmul %29, %30, %cst_7 {dimension_numbers = #tpu.dot_dimension_numbers<[1], [0], [0], [1], [0, 0, 1, 1], [], []>} : vector<256x128xf32>, vector<128x2xf32>, vector<256x2xf32> -> vector<256x2xf32>
    %c0_8 = arith.constant 0 : index
    %c0_9 = arith.constant 0 : index
    %32 = vector.load %arg5[%c0_8, %c0_9] : memref<1x2xf32, #tpu.memory_space<vmem>>, vector<1x2xf32>
    %33 = vector.broadcast %32 : vector<1x2xf32> to vector<256x2xf32>
    %34 = arith.addf %31, %33 : vector<256x2xf32>
    %c0_10 = arith.constant 0 : index
    %c0_11 = arith.constant 0 : index
    %35 = vector.load %arg6[%c0_10, %c0_11] : memref<256x2xf32, #tpu.memory_space<vmem>>, vector<256x2xf32>
    tpu.vector_store %arg6[%c0_10, %c0_11], %34 {strides = array<i32>} : memref<256x2xf32, #tpu.memory_space<vmem>>, vector<256x2xf32>,
    return
  }
  func.func @transform_0(%arg0: i32) -> (i32, i32) {
    %c0_i32 = arith.constant 0 : i32
    %c0_i32_0 = arith.constant 0 : i32
    return %arg0, %c0_i32 : i32, i32
  }
  func.func @transform_1(%arg0: i32) -> (i32, i32) {
    %c0_i32 = arith.constant 0 : i32
    %c0_i32_0 = arith.constant 0 : i32
    %c0_i32_1 = arith.constant 0 : i32
    return %c0_i32, %c0_i32_0 : i32, i32
  }
  func.func @transform_2(%arg0: i32) -> (i32, i32) {
    %c0_i32 = arith.constant 0 : i32
    %c0_i32_0 = arith.constant 0 : i32
    %c0_i32_1 = arith.constant 0 : i32
    return %c0_i32, %c0_i32_0 : i32, i32
  }
  func.func @transform_3(%arg0: i32) -> (i32, i32) {
    %c0_i32 = arith.constant 0 : i32
    %c0_i32_0 = arith.constant 0 : i32
    %c0_i32_1 = arith.constant 0 : i32
    return %c0_i32, %c0_i32_0 : i32, i32
  }
  func.func @transform_4(%arg0: i32) -> (i32, i32) {
    %c0_i32 = arith.constant 0 : i32
    %c0_i32_0 = arith.constant 0 : i32
    %c0_i32_1 = arith.constant 0 : i32
    return %c0_i32, %c0_i32_0 : i32, i32
  }
  func.func @transform_5(%arg0: i32) -> (i32, i32) {
    %c0_i32 = arith.constant 0 : i32
    %c0_i32_0 = arith.constant 0 : i32
    return %arg0, %c0_i32 : i32, i32
  }
}

</mosaic_0001>

<llo_original>
// kernel: tpu_custom_call.1
$region0: #{tpu_custom_call.1}
  #allocation0 [shape = 'u32[]', space=smem, size = 0x4, offset = 0x4, fixed_abs, tag = 'smem constant byte address 0x4 - core index']
  #allocation1 [shape = 'u32[144,128]{1,0:T(1,128)}', space=vmem, size = 0x12000, scoped, tag = 'internal scratch']
  %s0 = inlined_call_operand.vmem [shape: f32[256,4], index: 0, kind: input, shape index: {}]
  %s1 = inlined_call_operand.vmem [shape: f32[4,128], index: 1, kind: input, shape index: {}]
  %s2 = inlined_call_operand.vmem [shape: f32[1,128], index: 2, kind: input, shape index: {}]
  %s3 = inlined_call_operand.vmem [shape: f32[128,2], index: 3, kind: input, shape index: {}]
  %s4 = inlined_call_operand.vmem [shape: f32[1,2], index: 4, kind: input, shape index: {}]
  %s5 = inlined_call_operand.vmem [shape: f32[256,2], index: 5, kind: output, shape index: {}]
  %s6 = sld [smem:[#allocation0]]
  $region30: #{tpu_custom_call.1} parent=0
    _
  %s8 = ssub.s32 1, %s6
  %s9 = scalar_select 0, %s8, %s6
  // Predicated region
  $region2: #{tpu_custom_call.1} parent=0 // pred_check
    _
  $region3: #{tpu_custom_call.1} parent=0 // pred_check_branch
    %11 = sbr.rel (0) target = $region5
  $region4: #{tpu_custom_call.1} parent=0 // pred_region
    _
  $region5: #{tpu_custom_call.1} parent=0 // pred_fallthru
    _
  // Predicated region
  $region6: #{tpu_custom_call.1} parent=0 // pred_check
    _
  $region7: #{tpu_custom_call.1} parent=0 // pred_check_branch
    %13 = sbr.rel (0) target = $region9
  $region8: #{tpu_custom_call.1} parent=0 // pred_region
    _
  $region9: #{tpu_custom_call.1} parent=0 // pred_fallthru
    _
  // Predicated region
  $region10: #{tpu_custom_call.1} parent=0 // pred_check
    _
  $region11: #{tpu_custom_call.1} parent=0 // pred_check_branch
    %15 = sbr.rel (0) target = $region13
  $region12: #{tpu_custom_call.1} parent=0 // pred_region
    _
  $region13: #{tpu_custom_call.1} parent=0 // pred_fallthru
    _
  // Predicated region
  $region14: #{tpu_custom_call.1} parent=0 // pred_check
    _
  $region15: #{tpu_custom_call.1} parent=0 // pred_check_branch
    %17 = sbr.rel (0) target = $region17
  $region16: #{tpu_custom_call.1} parent=0 // pred_region
    _
  $region17: #{tpu_custom_call.1} parent=0 // pred_fallthru
    _
  // Predicated region
  $region18: #{tpu_custom_call.1} parent=0 // pred_check
    _
  $region19: #{tpu_custom_call.1} parent=0 // pred_check_branch
    %19 = sbr.rel (0) target = $region21
  $region20: #{tpu_custom_call.1} parent=0 // pred_region
    _
  $region21: #{tpu_custom_call.1} parent=0 // pred_fallthru
    _
  %v20 = vld [vmem:[%s0] sm:$0xff]
  %v21 = vld [vmem:[%s0 + $0x8] sm:$0xff]
  %v22 = vld [vmem:[%s0 + $0x10] sm:$0xff]
  %v23 = vld [vmem:[%s0 + $0x18] sm:$0xff]
  %v24 = vld [vmem:[%s0 + $0x20] sm:$0xff]
  %v25 = vld [vmem:[%s0 + $0x28] sm:$0xff]
  %v26 = vld [vmem:[%s0 + $0x30] sm:$0xff]
  %v27 = vld [vmem:[%s0 + $0x38] sm:$0xff]
  %v28 = vld [vmem:[%s0 + $0x40] sm:$0xff]
  %v29 = vld [vmem:[%s0 + $0x48] sm:$0xff]
  %v30 = vld [vmem:[%s0 + $0x50] sm:$0xff]
  %v31 = vld [vmem:[%s0 + $0x58] sm:$0xff]
  %v32 = vld [vmem:[%s0 + $0x60] sm:$0xff]
  %v33 = vld [vmem:[%s0 + $0x68] sm:$0xff]
  %v34 = vld [vmem:[%s0 + $0x70] sm:$0xff]
  %v35 = vld [vmem:[%s0 + $0x78] sm:$0xff]
  %v36 = vld [vmem:[%s0 + $0x80] sm:$0xff]
  %v37 = vld [vmem:[%s0 + $0x88] sm:$0xff]
  %v38 = vld [vmem:[%s0 + $0x90] sm:$0xff]
  %v39 = vld [vmem:[%s0 + $0x98] sm:$0xff]
  %v40 = vld [vmem:[%s0 + $0xa0] sm:$0xff]
  %v41 = vld [vmem:[%s0 + $0xa8] sm:$0xff]
  %v42 = vld [vmem:[%s0 + $0xb0] sm:$0xff]
  %v43 = vld [vmem:[%s0 + $0xb8] sm:$0xff]
  %v44 = vld [vmem:[%s0 + $0xc0] sm:$0xff]
  %v45 = vld [vmem:[%s0 + $0xc8] sm:$0xff]
  %v46 = vld [vmem:[%s0 + $0xd0] sm:$0xff]
  %v47 = vld [vmem:[%s0 + $0xd8] sm:$0xff]
  %v48 = vld [vmem:[%s0 + $0xe0] sm:$0xff]
  %v49 = vld [vmem:[%s0 + $0xe8] sm:$0xff]
  %v50 = vld [vmem:[%s0 + $0xf0] sm:$0xff]
  %v51 = vld [vmem:[%s0 + $0xf8] sm:$0xff]
  %v52 = vld [vmem:[%s1] sm:$0xf]
  %v53 = vld [vmem:[%s2] sm:$0x1]
  %55 = vset.pattern.permute.xlu0 0
  %56 = vperm.xlu0 %55, %v20
  %v57 = vpop.permute.xlu0 %56
  %60 = vset.pattern.permute.xlu0 0
  %61 = vperm.xlu0 %60, %v21
  %v62 = vpop.permute.xlu0 %61
  %65 = vset.pattern.permute.xlu0 0
  %66 = vperm.xlu0 %65, %v22
  %v67 = vpop.permute.xlu0 %66
  %70 = vset.pattern.permute.xlu0 0
  %71 = vperm.xlu0 %70, %v23
  %v72 = vpop.permute.xlu0 %71
  %75 = vset.pattern.permute.xlu0 0
  %76 = vperm.xlu0 %75, %v24
  %v77 = vpop.permute.xlu0 %76
  %80 = vset.pattern.permute.xlu0 0
  %81 = vperm.xlu0 %80, %v25
  %v82 = vpop.permute.xlu0 %81
  %85 = vset.pattern.permute.xlu0 0
  %86 = vperm.xlu0 %85, %v26
  %v87 = vpop.permute.xlu0 %86
  %90 = vset.pattern.permute.xlu0 0
  %91 = vperm.xlu0 %90, %v27
  %v92 = vpop.permute.xlu0 %91
  %95 = vset.pattern.permute.xlu0 0
  %96 = vperm.xlu0 %95, %v28
  %v97 = vpop.permute.xlu0 %96
  %100 = vset.pattern.permute.xlu0 0
  %101 = vperm.xlu0 %100, %v29
  %v102 = vpop.permute.xlu0 %101
  %105 = vset.pattern.permute.xlu0 0
  %106 = vperm.xlu0 %105, %v30
  %v107 = vpop.permute.xlu0 %106
  %110 = vset.pattern.permute.xlu0 0
  %111 = vperm.xlu0 %110, %v31
  %v112 = vpop.permute.xlu0 %111
  %115 = vset.pattern.permute.xlu0 0
  %116 = vperm.xlu0 %115, %v32
  %v117 = vpop.permute.xlu0 %116
  %120 = vset.pattern.permute.xlu0 0
  %121 = vperm.xlu0 %120, %v33
  %v122 = vpop.permute.xlu0 %121
  %125 = vset.pattern.permute.xlu0 0
  %126 = vperm.xlu0 %125, %v34
  %v127 = vpop.permute.xlu0 %126
  %130 = vset.pattern.permute.xlu0 0
  %131 = vperm.xlu0 %130, %v35
  %v132 = vpop.permute.xlu0 %131
  %135 = vset.pattern.permute.xlu0 0
  %136 = vperm.xlu0 %135, %v36
  %v137 = vpop.permute.xlu0 %136
  %140 = vset.pattern.permute.xlu0 0
  %141 = vperm.xlu0 %140, %v37
  %v142 = vpop.permute.xlu0 %141
  %145 = vset.pattern.permute.xlu0 0
  %146 = vperm.xlu0 %145, %v38
  %v147 = vpop.permute.xlu0 %146
  %150 = vset.pattern.permute.xlu0 0
  %151 = vperm.xlu0 %150, %v39
  %v152 = vpop.permute.xlu0 %151
  %155 = vset.pattern.permute.xlu0 0
  %156 = vperm.xlu0 %155, %v40
  %v157 = vpop.permute.xlu0 %156
  %160 = vset.pattern.permute.xlu0 0
  %161 = vperm.xlu0 %160, %v41
  %v162 = vpop.permute.xlu0 %161
  %165 = vset.pattern.permute.xlu0 0
  %166 = vperm.xlu0 %165, %v42
  %v167 = vpop.permute.xlu0 %166
  %170 = vset.pattern.permute.xlu0 0
  %171 = vperm.xlu0 %170, %v43
  %v172 = vpop.permute.xlu0 %171
  %175 = vset.pattern.permute.xlu0 0
  %176 = vperm.xlu0 %175, %v44
  %v177 = vpop.permute.xlu0 %176
  %180 = vset.pattern.permute.xlu0 0
  %181 = vperm.xlu0 %180, %v45
  %v182 = vpop.permute.xlu0 %181
  %185 = vset.pattern.permute.xlu0 0
  %186 = vperm.xlu0 %185, %v46
  %v187 = vpop.permute.xlu0 %186
  %190 = vset.pattern.permute.xlu0 0
  %191 = vperm.xlu0 %190, %v47
  %v192 = vpop.permute.xlu0 %191
  %195 = vset.pattern.permute.xlu0 0
  %196 = vperm.xlu0 %195, %v48
  %v197 = vpop.permute.xlu0 %196
  %200 = vset.pattern.permute.xlu0 0
  %201 = vperm.xlu0 %200, %v49
  %v202 = vpop.permute.xlu0 %201
  %205 = vset.pattern.permute.xlu0 0
  %206 = vperm.xlu0 %205, %v50
  %v207 = vpop.permute.xlu0 %206
  %210 = vset.pattern.permute.xlu0 0
  %211 = vperm.xlu0 %210, %v51
  %v212 = vpop.permute.xlu0 %211
  %v214 = vlaneseq
  %v215 = vshrl.u32 %v214, 7
  %v216 = vsub.s32 0, %v215
  %v217 = vrot.slane %v52, %v216
  %v218 = vmul.f32 %v57, %v217
  %v219 = vmul.f32 %v62, %v217
  %v220 = vmul.f32 %v67, %v217
  %v221 = vmul.f32 %v72, %v217
  %v222 = vmul.f32 %v77, %v217
  %v223 = vmul.f32 %v82, %v217
  %v224 = vmul.f32 %v87, %v217
  %v225 = vmul.f32 %v92, %v217
  %v226 = vmul.f32 %v97, %v217
  %v227 = vmul.f32 %v102, %v217
  %v228 = vmul.f32 %v107, %v217
  %v229 = vmul.f32 %v112, %v217
  %v230 = vmul.f32 %v117, %v217
  %v231 = vmul.f32 %v122, %v217
  %v232 = vmul.f32 %v127, %v217
  %v233 = vmul.f32 %v132, %v217
  %v234 = vmul.f32 %v137, %v217
  %v235 = vmul.f32 %v142, %v217
  %v236 = vmul.f32 %v147, %v217
  %v237 = vmul.f32 %v152, %v217
  %v238 = vmul.f32 %v157, %v217
  %v239 = vmul.f32 %v162, %v217
  %v240 = vmul.f32 %v167, %v217
  %v241 = vmul.f32 %v172, %v217
  %v242 = vmul.f32 %v177, %v217
  %v243 = vmul.f32 %v182, %v217
  %v244 = vmul.f32 %v187, %v217
  %v245 = vmul.f32 %v192, %v217
  %v246 = vmul.f32 %v197, %v217
  %v247 = vmul.f32 %v202, %v217
  %v248 = vmul.f32 %v207, %v217
  %v249 = vmul.f32 %v212, %v217
  %v251 = vlaneseq
  %v252 = vshrl.u32 %v251, 7
  %v253 = vsub.s32 0, %v252
  %v254 = vrot.slane %v53, %v253
  %v256 = vadd.f32 %v254, %v218
  %v257 = vadd.f32 %v254, %v219
  %v258 = vadd.f32 %v254, %v220
  %v259 = vadd.f32 %v254, %v221
  %v260 = vadd.f32 %v254, %v222
  %v261 = vadd.f32 %v254, %v223
  %v262 = vadd.f32 %v254, %v224
  %v263 = vadd.f32 %v254, %v225
  %v264 = vadd.f32 %v254, %v226
  %v265 = vadd.f32 %v254, %v227
  %v266 = vadd.f32 %v254, %v228
  %v267 = vadd.f32 %v254, %v229
  %v268 = vadd.f32 %v254, %v230
  %v269 = vadd.f32 %v254, %v231
  %v270 = vadd.f32 %v254, %v232
  %v271 = vadd.f32 %v254, %v233
  %v272 = vadd.f32 %v254, %v234
  %v273 = vadd.f32 %v254, %v235
  %v274 = vadd.f32 %v254, %v236
  %v275 = vadd.f32 %v254, %v237
  %v276 = vadd.f32 %v254, %v238
  %v277 = vadd.f32 %v254, %v239
  %v278 = vadd.f32 %v254, %v240
  %v279 = vadd.f32 %v254, %v241
  %v280 = vadd.f32 %v254, %v242
  %v281 = vadd.f32 %v254, %v243
  %v282 = vadd.f32 %v254, %v244
  %v283 = vadd.f32 %v254, %v245
  %v284 = vadd.f32 %v254, %v246
  %v285 = vadd.f32 %v254, %v247
  %v286 = vadd.f32 %v254, %v248
  %v287 = vadd.f32 %v254, %v249
  %288 = vset.pattern.permute.xlu0 1
  %289 = vperm.xlu0 %288, %v20
  %v290 = vpop.permute.xlu0 %289
  %292 = vset.pattern.permute.xlu0 1
  %293 = vperm.xlu0 %292, %v21
  %v294 = vpop.permute.xlu0 %293
  %296 = vset.pattern.permute.xlu0 1
  %297 = vperm.xlu0 %296, %v22
  %v298 = vpop.permute.xlu0 %297
  %300 = vset.pattern.permute.xlu0 1
  %301 = vperm.xlu0 %300, %v23
  %v302 = vpop.permute.xlu0 %301
  %304 = vset.pattern.permute.xlu0 1
  %305 = vperm.xlu0 %304, %v24
  %v306 = vpop.permute.xlu0 %305
  %308 = vset.pattern.permute.xlu0 1
  %309 = vperm.xlu0 %308, %v25
  %v310 = vpop.permute.xlu0 %309
  %312 = vset.pattern.permute.xlu0 1
  %313 = vperm.xlu0 %312, %v26
  %v314 = vpop.permute.xlu0 %313
  %316 = vset.pattern.permute.xlu0 1
  %317 = vperm.xlu0 %316, %v27
  %v318 = vpop.permute.xlu0 %317
  %320 = vset.pattern.permute.xlu0 1
  %321 = vperm.xlu0 %320, %v28
  %v322 = vpop.permute.xlu0 %321
  %324 = vset.pattern.permute.xlu0 1
  %325 = vperm.xlu0 %324, %v29
  %v326 = vpop.permute.xlu0 %325
  %328 = vset.pattern.permute.xlu0 1
  %329 = vperm.xlu0 %328, %v30
  %v330 = vpop.permute.xlu0 %329
  %332 = vset.pattern.permute.xlu0 1
  %333 = vperm.xlu0 %332, %v31
  %v334 = vpop.permute.xlu0 %333
  %336 = vset.pattern.permute.xlu0 1
  %337 = vperm.xlu0 %336, %v32
  %v338 = vpop.permute.xlu0 %337
  %340 = vset.pattern.permute.xlu0 1
  %341 = vperm.xlu0 %340, %v33
  %v342 = vpop.permute.xlu0 %341
  %344 = vset.pattern.permute.xlu0 1
  %345 = vperm.xlu0 %344, %v34
  %v346 = vpop.permute.xlu0 %345
  %348 = vset.pattern.permute.xlu0 1
  %349 = vperm.xlu0 %348, %v35
  %v350 = vpop.permute.xlu0 %349
  %352 = vset.pattern.permute.xlu0 1
  %353 = vperm.xlu0 %352, %v36
  %v354 = vpop.permute.xlu0 %353
  %356 = vset.pattern.permute.xlu0 1
  %357 = vperm.xlu0 %356, %v37
  %v358 = vpop.permute.xlu0 %357
  %360 = vset.pattern.permute.xlu0 1
  %361 = vperm.xlu0 %360, %v38
  %v362 = vpop.permute.xlu0 %361
  %364 = vset.pattern.permute.xlu0 1
  %365 = vperm.xlu0 %364, %v39
  %v366 = vpop.permute.xlu0 %365
  %368 = vset.pattern.permute.xlu0 1
  %369 = vperm.xlu0 %368, %v40
  %v370 = vpop.permute.xlu0 %369
  %372 = vset.pattern.permute.xlu0 1
  %373 = vperm.xlu0 %372, %v41
  %v374 = vpop.permute.xlu0 %373
  %376 = vset.pattern.permute.xlu0 1
  %377 = vperm.xlu0 %376, %v42
  %v378 = vpop.permute.xlu0 %377
  %380 = vset.pattern.permute.xlu0 1
  %381 = vperm.xlu0 %380, %v43
  %v382 = vpop.permute.xlu0 %381
  %384 = vset.pattern.permute.xlu0 1
  %385 = vperm.xlu0 %384, %v44
  %v386 = vpop.permute.xlu0 %385
  %388 = vset.pattern.permute.xlu0 1
  %389 = vperm.xlu0 %388, %v45
  %v390 = vpop.permute.xlu0 %389
  %392 = vset.pattern.permute.xlu0 1
  %393 = vperm.xlu0 %392, %v46
  %v394 = vpop.permute.xlu0 %393
  %396 = vset.pattern.permute.xlu0 1
  %397 = vperm.xlu0 %396, %v47
  %v398 = vpop.permute.xlu0 %397
  %400 = vset.pattern.permute.xlu0 1
  %401 = vperm.xlu0 %400, %v48
  %v402 = vpop.permute.xlu0 %401
  %404 = vset.pattern.permute.xlu0 1
  %405 = vperm.xlu0 %404, %v49
  %v406 = vpop.permute.xlu0 %405
  %408 = vset.pattern.permute.xlu0 1
  %409 = vperm.xlu0 %408, %v50
  %v410 = vpop.permute.xlu0 %409
  %412 = vset.pattern.permute.xlu0 1
  %413 = vperm.xlu0 %412, %v51
  %v414 = vpop.permute.xlu0 %413
  %v416 = vlaneseq
  %v417 = vshrl.u32 %v416, 7
  %v418 = vsub.s32 1, %v417
  %v419 = vrot.slane %v52, %v418
  %v420 = vmul.f32 %v290, %v419
  %v421 = vmul.f32 %v294, %v419
  %v422 = vmul.f32 %v298, %v419
  %v423 = vmul.f32 %v302, %v419
  %v424 = vmul.f32 %v306, %v419
  %v425 = vmul.f32 %v310, %v419
  %v426 = vmul.f32 %v314, %v419
  %v427 = vmul.f32 %v318, %v419
  %v428 = vmul.f32 %v322, %v419
  %v429 = vmul.f32 %v326, %v419
  %v430 = vmul.f32 %v330, %v419
  %v431 = vmul.f32 %v334, %v419
  %v432 = vmul.f32 %v338, %v419
  %v433 = vmul.f32 %v342, %v419
  %v434 = vmul.f32 %v346, %v419
  %v435 = vmul.f32 %v350, %v419
  %v436 = vmul.f32 %v354, %v419
  %v437 = vmul.f32 %v358, %v419
  %v438 = vmul.f32 %v362, %v419
  %v439 = vmul.f32 %v366, %v419
  %v440 = vmul.f32 %v370, %v419
  %v441 = vmul.f32 %v374, %v419
  %v442 = vmul.f32 %v378, %v419
  %v443 = vmul.f32 %v382, %v419
  %v444 = vmul.f32 %v386, %v419
  %v445 = vmul.f32 %v390, %v419
  %v446 = vmul.f32 %v394, %v419
  %v447 = vmul.f32 %v398, %v419
  %v448 = vmul.f32 %v402, %v419
  %v449 = vmul.f32 %v406, %v419
  %v450 = vmul.f32 %v410, %v419
  %v451 = vmul.f32 %v414, %v419
  %v452 = vadd.f32 %v256, %v420
  %v453 = vadd.f32 %v257, %v421
  %v454 = vadd.f32 %v258, %v422
  %v455 = vadd.f32 %v259, %v423
  %v456 = vadd.f32 %v260, %v424
  %v457 = vadd.f32 %v261, %v425
  %v458 = vadd.f32 %v262, %v426
  %v459 = vadd.f32 %v263, %v427
  %v460 = vadd.f32 %v264, %v428
  %v461 = vadd.f32 %v265, %v429
  %v462 = vadd.f32 %v266, %v430
  %v463 = vadd.f32 %v267, %v431
  %v464 = vadd.f32 %v268, %v432
  %v465 = vadd.f32 %v269, %v433
  %v466 = vadd.f32 %v270, %v434
  %v467 = vadd.f32 %v271, %v435
  %v468 = vadd.f32 %v272, %v436
  %v469 = vadd.f32 %v273, %v437
  %v470 = vadd.f32 %v274, %v438
  %v471 = vadd.f32 %v275, %v439
  %v472 = vadd.f32 %v276, %v440
  %v473 = vadd.f32 %v277, %v441
  %v474 = vadd.f32 %v278, %v442
  %v475 = vadd.f32 %v279, %v443
  %v476 = vadd.f32 %v280, %v444
  %v477 = vadd.f32 %v281, %v445
  %v478 = vadd.f32 %v282, %v446
  %v479 = vadd.f32 %v283, %v447
  %v480 = vadd.f32 %v284, %v448
  %v481 = vadd.f32 %v285, %v449
  %v482 = vadd.f32 %v286, %v450
  %v483 = vadd.f32 %v287, %v451
  %484 = vset.pattern.permute.xlu0 2
  %485 = vperm.xlu0 %484, %v20
  %v486 = vpop.permute.xlu0 %485
  %488 = vset.pattern.permute.xlu0 2
  %489 = vperm.xlu0 %488, %v21
  %v490 = vpop.permute.xlu0 %489
  %492 = vset.pattern.permute.xlu0 2
  %493 = vperm.xlu0 %492, %v22
  %v494 = vpop.permute.xlu0 %493
  %496 = vset.pattern.permute.xlu0 2
  %497 = vperm.xlu0 %496, %v23
  %v498 = vpop.permute.xlu0 %497
  %500 = vset.pattern.permute.xlu0 2
  %501 = vperm.xlu0 %500, %v24
  %v502 = vpop.permute.xlu0 %501
  %504 = vset.pattern.permute.xlu0 2
  %505 = vperm.xlu0 %504, %v25
  %v506 = vpop.permute.xlu0 %505
  %508 = vset.pattern.permute.xlu0 2
  %509 = vperm.xlu0 %508, %v26
  %v510 = vpop.permute.xlu0 %509
  %512 = vset.pattern.permute.xlu0 2
  %513 = vperm.xlu0 %512, %v27
  %v514 = vpop.permute.xlu0 %513
  %516 = vset.pattern.permute.xlu0 2
  %517 = vperm.xlu0 %516, %v28
  %v518 = vpop.permute.xlu0 %517
  %520 = vset.pattern.permute.xlu0 2
  %521 = vperm.xlu0 %520, %v29
  %v522 = vpop.permute.xlu0 %521
  %524 = vset.pattern.permute.xlu0 2
  %525 = vperm.xlu0 %524, %v30
  %v526 = vpop.permute.xlu0 %525
  %528 = vset.pattern.permute.xlu0 2
  %529 = vperm.xlu0 %528, %v31
  %v530 = vpop.permute.xlu0 %529
  %532 = vset.pattern.permute.xlu0 2
  %533 = vperm.xlu0 %532, %v32
  %v534 = vpop.permute.xlu0 %533
  %536 = vset.pattern.permute.xlu0 2
  %537 = vperm.xlu0 %536, %v33
  %v538 = vpop.permute.xlu0 %537
  %540 = vset.pattern.permute.xlu0 2
  %541 = vperm.xlu0 %540, %v34
  %v542 = vpop.permute.xlu0 %541
  %544 = vset.pattern.permute.xlu0 2
  %545 = vperm.xlu0 %544, %v35
  %v546 = vpop.permute.xlu0 %545
  %548 = vset.pattern.permute.xlu0 2
  %549 = vperm.xlu0 %548, %v36
  %v550 = vpop.permute.xlu0 %549
  %552 = vset.pattern.permute.xlu0 2
  %553 = vperm.xlu0 %552, %v37
  %v554 = vpop.permute.xlu0 %553
  %556 = vset.pattern.permute.xlu0 2
  %557 = vperm.xlu0 %556, %v38
  %v558 = vpop.permute.xlu0 %557
  %560 = vset.pattern.permute.xlu0 2
  %561 = vperm.xlu0 %560, %v39
  %v562 = vpop.permute.xlu0 %561
  %564 = vset.pattern.permute.xlu0 2
  %565 = vperm.xlu0 %564, %v40
  %v566 = vpop.permute.xlu0 %565
  %568 = vset.pattern.permute.xlu0 2
  %569 = vperm.xlu0 %568, %v41
  %v570 = vpop.permute.xlu0 %569
  %572 = vset.pattern.permute.xlu0 2
  %573 = vperm.xlu0 %572, %v42
  %v574 = vpop.permute.xlu0 %573
  %576 = vset.pattern.permute.xlu0 2
  %577 = vperm.xlu0 %576, %v43
  %v578 = vpop.permute.xlu0 %577
  %580 = vset.pattern.permute.xlu0 2
  %581 = vperm.xlu0 %580, %v44
  %v582 = vpop.permute.xlu0 %581
  %584 = vset.pattern.permute.xlu0 2
  %585 = vperm.xlu0 %584, %v45
  %v586 = vpop.permute.xlu0 %585
  %588 = vset.pattern.permute.xlu0 2
  %589 = vperm.xlu0 %588, %v46
  %v590 = vpop.permute.xlu0 %589
  %592 = vset.pattern.permute.xlu0 2
  %593 = vperm.xlu0 %592, %v47
  %v594 = vpop.permute.xlu0 %593
  %596 = vset.pattern.permute.xlu0 2
  %597 = vperm.xlu0 %596, %v48
  %v598 = vpop.permute.xlu0 %597
  %600 = vset.pattern.permute.xlu0 2
  %601 = vperm.xlu0 %600, %v49
  %v602 = vpop.permute.xlu0 %601
  %604 = vset.pattern.permute.xlu0 2
  %605 = vperm.xlu0 %604, %v50
  %v606 = vpop.permute.xlu0 %605
  %608 = vset.pattern.permute.xlu0 2
  %609 = vperm.xlu0 %608, %v51
  %v610 = vpop.permute.xlu0 %609
  %v612 = vlaneseq
  %v613 = vshrl.u32 %v612, 7
  %v614 = vsub.s32 2, %v613
  %v615 = vrot.slane %v52, %v614
  %v616 = vmul.f32 %v486, %v615
  %v617 = vmul.f32 %v490, %v615
  %v618 = vmul.f32 %v494, %v615
  %v619 = vmul.f32 %v498, %v615
  %v620 = vmul.f32 %v502, %v615
  %v621 = vmul.f32 %v506, %v615
  %v622 = vmul.f32 %v510, %v615
  %v623 = vmul.f32 %v514, %v615
  %v624 = vmul.f32 %v518, %v615
  %v625 = vmul.f32 %v522, %v615
  %v626 = vmul.f32 %v526, %v615
  %v627 = vmul.f32 %v530, %v615
  %v628 = vmul.f32 %v534, %v615
  %v629 = vmul.f32 %v538, %v615
  %v630 = vmul.f32 %v542, %v615
  %v631 = vmul.f32 %v546, %v615
  %v632 = vmul.f32 %v550, %v615
  %v633 = vmul.f32 %v554, %v615
  %v634 = vmul.f32 %v558, %v615
  %v635 = vmul.f32 %v562, %v615
  %v636 = vmul.f32 %v566, %v615
  %v637 = vmul.f32 %v570, %v615
  %v638 = vmul.f32 %v574, %v615
  %v639 = vmul.f32 %v578, %v615
  %v640 = vmul.f32 %v582, %v615
  %v641 = vmul.f32 %v586, %v615
  %v642 = vmul.f32 %v590, %v615
  %v643 = vmul.f32 %v594, %v615
  %v644 = vmul.f32 %v598, %v615
  %v645 = vmul.f32 %v602, %v615
  %v646 = vmul.f32 %v606, %v615
  %v647 = vmul.f32 %v610, %v615
  %v648 = vadd.f32 %v452, %v616
  %v649 = vadd.f32 %v453, %v617
  %v650 = vadd.f32 %v454, %v618
  %v651 = vadd.f32 %v455, %v619
  %v652 = vadd.f32 %v456, %v620
  %v653 = vadd.f32 %v457, %v621
  %v654 = vadd.f32 %v458, %v622
  %v655 = vadd.f32 %v459, %v623
  %v656 = vadd.f32 %v460, %v624
  %v657 = vadd.f32 %v461, %v625
  %v658 = vadd.f32 %v462, %v626
  %v659 = vadd.f32 %v463, %v627
  %v660 = vadd.f32 %v464, %v628
  %v661 = vadd.f32 %v465, %v629
  %v662 = vadd.f32 %v466, %v630
  %v663 = vadd.f32 %v467, %v631
  %v664 = vadd.f32 %v468, %v632
  %v665 = vadd.f32 %v469, %v633
  %v666 = vadd.f32 %v470, %v634
  %v667 = vadd.f32 %v471, %v635
  %v668 = vadd.f32 %v472, %v636
  %v669 = vadd.f32 %v473, %v637
  %v670 = vadd.f32 %v474, %v638
  %v671 = vadd.f32 %v475, %v639
  %v672 = vadd.f32 %v476, %v640
  %v673 = vadd.f32 %v477, %v641
  %v674 = vadd.f32 %v478, %v642
  %v675 = vadd.f32 %v479, %v643
  %v676 = vadd.f32 %v480, %v644
  %v677 = vadd.f32 %v481, %v645
  %v678 = vadd.f32 %v482, %v646
  %v679 = vadd.f32 %v483, %v647
  %680 = vset.pattern.permute.xlu0 3
  %681 = vperm.xlu0 %680, %v20
  %v682 = vpop.permute.xlu0 %681
  %684 = vset.pattern.permute.xlu0 3
  %685 = vperm.xlu0 %684, %v21
  %v686 = vpop.permute.xlu0 %685
  %688 = vset.pattern.permute.xlu0 3
  %689 = vperm.xlu0 %688, %v22
  %v690 = vpop.permute.xlu0 %689
  %692 = vset.pattern.permute.xlu0 3
  %693 = vperm.xlu0 %692, %v23
  %v694 = vpop.permute.xlu0 %693
  %696 = vset.pattern.permute.xlu0 3
  %697 = vperm.xlu0 %696, %v24
  %v698 = vpop.permute.xlu0 %697
  %700 = vset.pattern.permute.xlu0 3
  %701 = vperm.xlu0 %700, %v25
  %v702 = vpop.permute.xlu0 %701
  %704 = vset.pattern.permute.xlu0 3
  %705 = vperm.xlu0 %704, %v26
  %v706 = vpop.permute.xlu0 %705
  %708 = vset.pattern.permute.xlu0 3
  %709 = vperm.xlu0 %708, %v27
  %v710 = vpop.permute.xlu0 %709
  %712 = vset.pattern.permute.xlu0 3
  %713 = vperm.xlu0 %712, %v28
  %v714 = vpop.permute.xlu0 %713
  %716 = vset.pattern.permute.xlu0 3
  %717 = vperm.xlu0 %716, %v29
  %v718 = vpop.permute.xlu0 %717
  %720 = vset.pattern.permute.xlu0 3
  %721 = vperm.xlu0 %720, %v30
  %v722 = vpop.permute.xlu0 %721
  %724 = vset.pattern.permute.xlu0 3
  %725 = vperm.xlu0 %724, %v31
  %v726 = vpop.permute.xlu0 %725
  %728 = vset.pattern.permute.xlu0 3
  %729 = vperm.xlu0 %728, %v32
  %v730 = vpop.permute.xlu0 %729
  %732 = vset.pattern.permute.xlu0 3
  %733 = vperm.xlu0 %732, %v33
  %v734 = vpop.permute.xlu0 %733
  %736 = vset.pattern.permute.xlu0 3
  %737 = vperm.xlu0 %736, %v34
  %v738 = vpop.permute.xlu0 %737
  %740 = vset.pattern.permute.xlu0 3
  %741 = vperm.xlu0 %740, %v35
  %v742 = vpop.permute.xlu0 %741
  %744 = vset.pattern.permute.xlu0 3
  %745 = vperm.xlu0 %744, %v36
  %v746 = vpop.permute.xlu0 %745
  %748 = vset.pattern.permute.xlu0 3
  %749 = vperm.xlu0 %748, %v37
  %v750 = vpop.permute.xlu0 %749
  %752 = vset.pattern.permute.xlu0 3
  %753 = vperm.xlu0 %752, %v38
  %v754 = vpop.permute.xlu0 %753
  %756 = vset.pattern.permute.xlu0 3
  %757 = vperm.xlu0 %756, %v39
  %v758 = vpop.permute.xlu0 %757
  %760 = vset.pattern.permute.xlu0 3
  %761 = vperm.xlu0 %760, %v40
  %v762 = vpop.permute.xlu0 %761
  %764 = vset.pattern.permute.xlu0 3
  %765 = vperm.xlu0 %764, %v41
  %v766 = vpop.permute.xlu0 %765
  %768 = vset.pattern.permute.xlu0 3
  %769 = vperm.xlu0 %768, %v42
  %v770 = vpop.permute.xlu0 %769
  %772 = vset.pattern.permute.xlu0 3
  %773 = vperm.xlu0 %772, %v43
  %v774 = vpop.permute.xlu0 %773
  %776 = vset.pattern.permute.xlu0 3
  %777 = vperm.xlu0 %776, %v44
  %v778 = vpop.permute.xlu0 %777
  %780 = vset.pattern.permute.xlu0 3
  %781 = vperm.xlu0 %780, %v45
  %v782 = vpop.permute.xlu0 %781
  %784 = vset.pattern.permute.xlu0 3
  %785 = vperm.xlu0 %784, %v46
  %v786 = vpop.permute.xlu0 %785
  %788 = vset.pattern.permute.xlu0 3
  %789 = vperm.xlu0 %788, %v47
  %v790 = vpop.permute.xlu0 %789
  %792 = vset.pattern.permute.xlu0 3
  %793 = vperm.xlu0 %792, %v48
  %v794 = vpop.permute.xlu0 %793
  %796 = vset.pattern.permute.xlu0 3
  %797 = vperm.xlu0 %796, %v49
  %v798 = vpop.permute.xlu0 %797
  %800 = vset.pattern.permute.xlu0 3
  %801 = vperm.xlu0 %800, %v50
  %v802 = vpop.permute.xlu0 %801
  %804 = vset.pattern.permute.xlu0 3
  %805 = vperm.xlu0 %804, %v51
  %v806 = vpop.permute.xlu0 %805
  %v808 = vlaneseq
  %v809 = vshrl.u32 %v808, 7
  %v810 = vsub.s32 3, %v809
  %v811 = vrot.slane %v52, %v810
  %v812 = vmul.f32 %v682, %v811
  %v813 = vmul.f32 %v686, %v811
  %v814 = vmul.f32 %v690, %v811
  %v815 = vmul.f32 %v694, %v811
  %v816 = vmul.f32 %v698, %v811
  %v817 = vmul.f32 %v702, %v811
  %v818 = vmul.f32 %v706, %v811
  %v819 = vmul.f32 %v710, %v811
  %v820 = vmul.f32 %v714, %v811
  %v821 = vmul.f32 %v718, %v811
  %v822 = vmul.f32 %v722, %v811
  %v823 = vmul.f32 %v726, %v811
  %v824 = vmul.f32 %v730, %v811
  %v825 = vmul.f32 %v734, %v811
  %v826 = vmul.f32 %v738, %v811
  %v827 = vmul.f32 %v742, %v811
  %v828 = vmul.f32 %v746, %v811
  %v829 = vmul.f32 %v750, %v811
  %v830 = vmul.f32 %v754, %v811
  %v831 = vmul.f32 %v758, %v811
  %v832 = vmul.f32 %v762, %v811
  %v833 = vmul.f32 %v766, %v811
  %v834 = vmul.f32 %v770, %v811
  %v835 = vmul.f32 %v774, %v811
  %v836 = vmul.f32 %v778, %v811
  %v837 = vmul.f32 %v782, %v811
  %v838 = vmul.f32 %v786, %v811
  %v839 = vmul.f32 %v790, %v811
  %v840 = vmul.f32 %v794, %v811
  %v841 = vmul.f32 %v798, %v811
  %v842 = vmul.f32 %v802, %v811
  %v843 = vmul.f32 %v806, %v811
  %v844 = vadd.f32 %v648, %v812
  %v845 = vadd.f32 %v649, %v813
  %v846 = vadd.f32 %v650, %v814
  %v847 = vadd.f32 %v651, %v815
  %v848 = vadd.f32 %v652, %v816
  %v849 = vadd.f32 %v653, %v817
  %v850 = vadd.f32 %v654, %v818
  %v851 = vadd.f32 %v655, %v819
  %v852 = vadd.f32 %v656, %v820
  %v853 = vadd.f32 %v657, %v821
  %v854 = vadd.f32 %v658, %v822
  %v855 = vadd.f32 %v659, %v823
  %v856 = vadd.f32 %v660, %v824
  %v857 = vadd.f32 %v661, %v825
  %v858 = vadd.f32 %v662, %v826
  %v859 = vadd.f32 %v663, %v827
  %v860 = vadd.f32 %v664, %v828
  %v861 = vadd.f32 %v665, %v829
  %v862 = vadd.f32 %v666, %v830
  %v863 = vadd.f32 %v667, %v831
  %v864 = vadd.f32 %v668, %v832
  %v865 = vadd.f32 %v669, %v833
  %v866 = vadd.f32 %v670, %v834
  %v867 = vadd.f32 %v671, %v835
  %v868 = vadd.f32 %v672, %v836
  %v869 = vadd.f32 %v673, %v837
  %v870 = vadd.f32 %v674, %v838
  %v871 = vadd.f32 %v675, %v839
  %v872 = vadd.f32 %v676, %v840
  %v873 = vadd.f32 %v677, %v841
  %v874 = vadd.f32 %v678, %v842
  %v875 = vadd.f32 %v679, %v843
  %v876 = vmax.f32 %v844, 0.0
  %v877 = vmax.f32 %v845, 0.0
  %v878 = vmax.f32 %v846, 0.0
  %v879 = vmax.f32 %v847, 0.0
  %v880 = vmax.f32 %v848, 0.0
  %v881 = vmax.f32 %v849, 0.0
  %v882 = vmax.f32 %v850, 0.0
  %v883 = vmax.f32 %v851, 0.0
  %v884 = vmax.f32 %v852, 0.0
  %v885 = vmax.f32 %v853, 0.0
  %v886 = vmax.f32 %v854, 0.0
  %v887 = vmax.f32 %v855, 0.0
  %v888 = vmax.f32 %v856, 0.0
  %v889 = vmax.f32 %v857, 0.0
  %v890 = vmax.f32 %v858, 0.0
  %v891 = vmax.f32 %v859, 0.0
  %v892 = vmax.f32 %v860, 0.0
  %v893 = vmax.f32 %v861, 0.0
  %v894 = vmax.f32 %v862, 0.0
  %v895 = vmax.f32 %v863, 0.0
  %v896 = vmax.f32 %v864, 0.0
  %v897 = vmax.f32 %v865, 0.0
  %v898 = vmax.f32 %v866, 0.0
  %v899 = vmax.f32 %v867, 0.0
  %v900 = vmax.f32 %v868, 0.0
  %v901 = vmax.f32 %v869, 0.0
  %v902 = vmax.f32 %v870, 0.0
  %v903 = vmax.f32 %v871, 0.0
  %v904 = vmax.f32 %v872, 0.0
  %v905 = vmax.f32 %v873, 0.0
  %v906 = vmax.f32 %v874, 0.0
  %v907 = vmax.f32 %v875, 0.0
  %v908 = vld [vmem:[%s3] sm:$0xff]
  %v909 = vld [vmem:[%s3 + $0x8] sm:$0xff]
  %v910 = vld [vmem:[%s3 + $0x10] sm:$0xff]
  %v911 = vld [vmem:[%s3 + $0x18] sm:$0xff]
  %v912 = vld [vmem:[%s3 + $0x20] sm:$0xff]
  %v913 = vld [vmem:[%s3 + $0x28] sm:$0xff]
  %v914 = vld [vmem:[%s3 + $0x30] sm:$0xff]
  %v915 = vld [vmem:[%s3 + $0x38] sm:$0xff]
  %v916 = vld [vmem:[%s3 + $0x40] sm:$0xff]
  %v917 = vld [vmem:[%s3 + $0x48] sm:$0xff]
  %v918 = vld [vmem:[%s3 + $0x50] sm:$0xff]
  %v919 = vld [vmem:[%s3 + $0x58] sm:$0xff]
  %v920 = vld [vmem:[%s3 + $0x60] sm:$0xff]
  %v921 = vld [vmem:[%s3 + $0x68] sm:$0xff]
  %v922 = vld [vmem:[%s3 + $0x70] sm:$0xff]
  %v923 = vld [vmem:[%s3 + $0x78] sm:$0xff]
  %v924 = vld [vmem:[%s4] sm:$0x1]
  %v926 = vlaneseq
  %v927 = vshrl.u32 %v926, 7
  %v928 = vsub.s32 0, %v927
  %v929 = vrot.slane %v924, %v928
  %931 = vmatprep.subr.mxu0 0.0
  %932 = vmatpush1.msra.mxu0 %v908
  %933 = vmatprep.subr.mxu0 0.0
  %934 = vmatpush1.msra.mxu0 %v909
  %935 = vmatprep.subr.mxu0 0.0
  %936 = vmatpush1.msra.mxu0 %v910
  %937 = vmatprep.subr.mxu0 0.0
  %938 = vmatpush1.msra.mxu0 %v911
  %939 = vmatprep.subr.mxu0 0.0
  %940 = vmatpush1.msra.mxu0 %v912
  %941 = vmatprep.subr.mxu0 0.0
  %942 = vmatpush1.msra.mxu0 %v913
  %943 = vmatprep.subr.mxu0 0.0
  %944 = vmatpush1.msra.mxu0 %v914
  %945 = vmatprep.subr.mxu0 0.0
  %946 = vmatpush1.msra.mxu0 %v915
  %947 = vmatprep.subr.mxu0 0.0
  %948 = vmatpush1.msra.mxu0 %v916
  %949 = vmatprep.subr.mxu0 0.0
  %950 = vmatpush1.msra.mxu0 %v917
  %951 = vmatprep.subr.mxu0 0.0
  %952 = vmatpush1.msra.mxu0 %v918
  %953 = vmatprep.subr.mxu0 0.0
  %954 = vmatpush1.msra.mxu0 %v919
  %955 = vmatprep.subr.mxu0 0.0
  %956 = vmatpush1.msra.mxu0 %v920
  %957 = vmatprep.subr.mxu0 0.0
  %958 = vmatpush1.msra.mxu0 %v921
  %959 = vmatprep.subr.mxu0 0.0
  %960 = vmatpush1.msra.mxu0 %v922
  %961 = vmatprep.subr.mxu0 0.0
  %962 = vmatpush1.msra.mxu0 %v923
  %963 = vmatprep.subr.mxu0 0.0
  %964 = vmatpush1.msra.mxu0 0.0
  %965 = vmatprep.subr.mxu0 0.0
  %966 = vmatpush1.msra.mxu0 0.0
  %967 = vmatprep.subr.mxu0 0.0
  %968 = vmatpush1.msra.mxu0 0.0
  %969 = vmatprep.subr.mxu0 0.0
  %970 = vmatpush1.msra.mxu0 0.0
  %971 = vmatprep.subr.mxu0 0.0
  %972 = vmatpush1.msra.mxu0 0.0
  %973 = vmatprep.subr.mxu0 0.0
  %974 = vmatpush1.msra.mxu0 0.0
  %975 = vmatprep.subr.mxu0 0.0
  %976 = vmatpush1.msra.mxu0 0.0
  %977 = vmatprep.subr.mxu0 0.0
  %978 = vmatpush1.msra.mxu0 0.0
  %979 = vmatprep.subr.mxu0 0.0
  %980 = vmatpush1.msra.mxu0 0.0
  %981 = vmatprep.subr.mxu0 0.0
  %982 = vmatpush1.msra.mxu0 0.0
  %983 = vmatprep.subr.mxu0 0.0
  %984 = vmatpush1.msra.mxu0 0.0
  %985 = vmatprep.subr.mxu0 0.0
  %986 = vmatpush1.msra.mxu0 0.0
  %987 = vmatprep.subr.mxu0 0.0
  %988 = vmatpush1.msra.mxu0 0.0
  %989 = vmatprep.subr.mxu0 0.0
  %990 = vmatpush1.msra.mxu0 0.0
  %991 = vmatprep.subr.mxu0 0.0
  %992 = vmatpush1.msra.mxu0 0.0
  %993 = vmatprep.subr.mxu0 0.0
  %994 = vmatpush1.msra.mxu0 0.0
  %995 = vmatprep.mubr.f32.mxu0 0.0
  %996 = vmatmul.mubr.f32.gmra.mrb[0].mxu0 %v876
  %v997 = vpop.f32.mrb[0].mxu0
  %v998 = vadd.f32 %v929, %v997
  %v999 = vpop.f32.mrb[0].mxu0
  %1000 = vmatprep.mubr.f32.mxu0 0.0
  %1001 = vmatmul.mubr.f32.gmra.mrb[0].mxu0 %v877
  %v1002 = vpop.f32.mrb[0].mxu0
  %v1003 = vadd.f32 %v929, %v1002
  %v1004 = vpop.f32.mrb[0].mxu0
  %1005 = vmatprep.mubr.f32.mxu0 0.0
  %1006 = vmatmul.mubr.f32.gmra.mrb[0].mxu0 %v878
  %v1007 = vpop.f32.mrb[0].mxu0
  %v1008 = vadd.f32 %v929, %v1007
  %v1009 = vpop.f32.mrb[0].mxu0
  %1010 = vmatprep.mubr.f32.mxu0 0.0
  %1011 = vmatmul.mubr.f32.gmra.mrb[0].mxu0 %v879
  %v1012 = vpop.f32.mrb[0].mxu0
  %v1013 = vadd.f32 %v929, %v1012
  %v1014 = vpop.f32.mrb[0].mxu0
  %1015 = vmatprep.mubr.f32.mxu0 0.0
  %1016 = vmatmul.mubr.f32.gmra.mrb[0].mxu0 %v880
  %v1017 = vpop.f32.mrb[0].mxu0
  %v1018 = vadd.f32 %v929, %v1017
  %v1019 = vpop.f32.mrb[0].mxu0
  %1020 = vmatprep.mubr.f32.mxu0 0.0
  %1021 = vmatmul.mubr.f32.gmra.mrb[0].mxu0 %v881
  %v1022 = vpop.f32.mrb[0].mxu0
  %v1023 = vadd.f32 %v929, %v1022
  %v1024 = vpop.f32.mrb[0].mxu0
  %1025 = vmatprep.mubr.f32.mxu0 0.0
  %1026 = vmatmul.mubr.f32.gmra.mrb[0].mxu0 %v882
  %v1027 = vpop.f32.mrb[0].mxu0
  %v1028 = vadd.f32 %v929, %v1027
  %v1029 = vpop.f32.mrb[0].mxu0
  %1030 = vmatprep.mubr.f32.mxu0 0.0
  %1031 = vmatmul.mubr.f32.gmra.mrb[0].mxu0 %v883
  %v1032 = vpop.f32.mrb[0].mxu0
  %v1033 = vadd.f32 %v929, %v1032
  %v1034 = vpop.f32.mrb[0].mxu0
  %1035 = vmatprep.mubr.f32.mxu0 0.0
  %1036 = vmatmul.mubr.f32.gmra.mrb[0].mxu0 %v884
  %v1037 = vpop.f32.mrb[0].mxu0
  %v1038 = vadd.f32 %v929, %v1037
  %v1039 = vpop.f32.mrb[0].mxu0
  %1040 = vmatprep.mubr.f32.mxu0 0.0
  %1041 = vmatmul.mubr.f32.gmra.mrb[0].mxu0 %v885
  %v1042 = vpop.f32.mrb[0].mxu0
  %v1043 = vadd.f32 %v929, %v1042
  %v1044 = vpop.f32.mrb[0].mxu0
  %1045 = vmatprep.mubr.f32.mxu0 0.0
  %1046 = vmatmul.mubr.f32.gmra.mrb[0].mxu0 %v886
  %v1047 = vpop.f32.mrb[0].mxu0
  %v1048 = vadd.f32 %v929, %v1047
  %v1049 = vpop.f32.mrb[0].mxu0
  %1050 = vmatprep.mubr.f32.mxu0 0.0
  %1051 = vmatmul.mubr.f32.gmra.mrb[0].mxu0 %v887
  %v1052 = vpop.f32.mrb[0].mxu0
  %v1053 = vadd.f32 %v929, %v1052
  %v1054 = vpop.f32.mrb[0].mxu0
  %1055 = vmatprep.mubr.f32.mxu0 0.0
  %1056 = vmatmul.mubr.f32.gmra.mrb[0].mxu0 %v888
  %v1057 = vpop.f32.mrb[0].mxu0
  %v1058 = vadd.f32 %v929, %v1057
  %v1059 = vpop.f32.mrb[0].mxu0
  %1060 = vmatprep.mubr.f32.mxu0 0.0
  %1061 = vmatmul.mubr.f32.gmra.mrb[0].mxu0 %v889
  %v1062 = vpop.f32.mrb[0].mxu0
  %v1063 = vadd.f32 %v929, %v1062
  %v1064 = vpop.f32.mrb[0].mxu0
  %1065 = vmatprep.mubr.f32.mxu0 0.0
  %1066 = vmatmul.mubr.f32.gmra.mrb[0].mxu0 %v890
  %v1067 = vpop.f32.mrb[0].mxu0
  %v1068 = vadd.f32 %v929, %v1067
  %v1069 = vpop.f32.mrb[0].mxu0
  %1070 = vmatprep.mubr.f32.mxu0 0.0
  %1071 = vmatmul.mubr.f32.gmra.mrb[0].mxu0 %v891
  %v1072 = vpop.f32.mrb[0].mxu0
  %v1073 = vadd.f32 %v929, %v1072
  %v1074 = vpop.f32.mrb[0].mxu0
  %1075 = vmatprep.mubr.f32.mxu0 0.0
  %1076 = vmatmul.mubr.f32.gmra.mrb[0].mxu0 %v892
  %v1077 = vpop.f32.mrb[0].mxu0
  %v1078 = vadd.f32 %v929, %v1077
  %v1079 = vpop.f32.mrb[0].mxu0
  %1080 = vmatprep.mubr.f32.mxu0 0.0
  %1081 = vmatmul.mubr.f32.gmra.mrb[0].mxu0 %v893
  %v1082 = vpop.f32.mrb[0].mxu0
  %v1083 = vadd.f32 %v929, %v1082
  %v1084 = vpop.f32.mrb[0].mxu0
  %1085 = vmatprep.mubr.f32.mxu0 0.0
  %1086 = vmatmul.mubr.f32.gmra.mrb[0].mxu0 %v894
  %v1087 = vpop.f32.mrb[0].mxu0
  %v1088 = vadd.f32 %v929, %v1087
  %v1089 = vpop.f32.mrb[0].mxu0
  %1090 = vmatprep.mubr.f32.mxu0 0.0
  %1091 = vmatmul.mubr.f32.gmra.mrb[0].mxu0 %v895
  %v1092 = vpop.f32.mrb[0].mxu0
  %v1093 = vadd.f32 %v929, %v1092
  %v1094 = vpop.f32.mrb[0].mxu0
  %1095 = vmatprep.mubr.f32.mxu0 0.0
  %1096 = vmatmul.mubr.f32.gmra.mrb[0].mxu0 %v896
  %v1097 = vpop.f32.mrb[0].mxu0
  %v1098 = vadd.f32 %v929, %v1097
  %v1099 = vpop.f32.mrb[0].mxu0
  %1100 = vmatprep.mubr.f32.mxu0 0.0
  %1101 = vmatmul.mubr.f32.gmra.mrb[0].mxu0 %v897
  %v1102 = vpop.f32.mrb[0].mxu0
  %v1103 = vadd.f32 %v929, %v1102
  %v1104 = vpop.f32.mrb[0].mxu0
  %1105 = vmatprep.mubr.f32.mxu0 0.0
  %1106 = vmatmul.mubr.f32.gmra.mrb[0].mxu0 %v898
  %v1107 = vpop.f32.mrb[0].mxu0
  %v1108 = vadd.f32 %v929, %v1107
  %v1109 = vpop.f32.mrb[0].mxu0
  %1110 = vmatprep.mubr.f32.mxu0 0.0
  %1111 = vmatmul.mubr.f32.gmra.mrb[0].mxu0 %v899
  %v1112 = vpop.f32.mrb[0].mxu0
  %v1113 = vadd.f32 %v929, %v1112
  %v1114 = vpop.f32.mrb[0].mxu0
  %1115 = vmatprep.mubr.f32.mxu0 0.0
  %1116 = vmatmul.mubr.f32.gmra.mrb[0].mxu0 %v900
  %v1117 = vpop.f32.mrb[0].mxu0
  %v1118 = vadd.f32 %v929, %v1117
  %v1119 = vpop.f32.mrb[0].mxu0
  %1120 = vmatprep.mubr.f32.mxu0 0.0
  %1121 = vmatmul.mubr.f32.gmra.mrb[0].mxu0 %v901
  %v1122 = vpop.f32.mrb[0].mxu0
  %v1123 = vadd.f32 %v929, %v1122
  %v1124 = vpop.f32.mrb[0].mxu0
  %1125 = vmatprep.mubr.f32.mxu0 0.0
  %1126 = vmatmul.mubr.f32.gmra.mrb[0].mxu0 %v902
  %v1127 = vpop.f32.mrb[0].mxu0
  %v1128 = vadd.f32 %v929, %v1127
  %v1129 = vpop.f32.mrb[0].mxu0
  %1130 = vmatprep.mubr.f32.mxu0 0.0
  %1131 = vmatmul.mubr.f32.gmra.mrb[0].mxu0 %v903
  %v1132 = vpop.f32.mrb[0].mxu0
  %v1133 = vadd.f32 %v929, %v1132
  %v1134 = vpop.f32.mrb[0].mxu0
  %1135 = vmatprep.mubr.f32.mxu0 0.0
  %1136 = vmatmul.mubr.f32.gmra.mrb[0].mxu0 %v904
  %v1137 = vpop.f32.mrb[0].mxu0
  %v1138 = vadd.f32 %v929, %v1137
  %v1139 = vpop.f32.mrb[0].mxu0
  %1140 = vmatprep.mubr.f32.mxu0 0.0
  %1141 = vmatmul.mubr.f32.gmra.mrb[0].mxu0 %v905
  %v1142 = vpop.f32.mrb[0].mxu0
  %v1143 = vadd.f32 %v929, %v1142
  %v1144 = vpop.f32.mrb[0].mxu0
  %1145 = vmatprep.mubr.f32.mxu0 0.0
  %1146 = vmatmul.mubr.f32.gmra.mrb[0].mxu0 %v906
  %v1147 = vpop.f32.mrb[0].mxu0
  %v1148 = vadd.f32 %v929, %v1147
  %v1149 = vpop.f32.mrb[0].mxu0
  %1150 = vmatprep.mubr.f32.mxu0 0.0
  %1151 = vmatmul.mubr.f32.gmra.mrb[0].mxu0 %v907
  %v1152 = vpop.f32.mrb[0].mxu0
  %v1153 = vadd.f32 %v929, %v1152
  %v1154 = vpop.f32.mrb[0].mxu0
  %1155 = vdwg.mxu0
  %vm1156 = vcmask 15360
  %1157 = vst.msk [vmem:[%s5] sm:$0xff] %vm1156, %v998
  %1158 = vst.msk [vmem:[%s5 + $0x8] sm:$0xff] %vm1156, %v1003
  %1159 = vst.msk [vmem:[%s5 + $0x10] sm:$0xff] %vm1156, %v1008
  %1160 = vst.msk [vmem:[%s5 + $0x18] sm:$0xff] %vm1156, %v1013
  %1161 = vst.msk [vmem:[%s5 + $0x20] sm:$0xff] %vm1156, %v1018
  %1162 = vst.msk [vmem:[%s5 + $0x28] sm:$0xff] %vm1156, %v1023
  %1163 = vst.msk [vmem:[%s5 + $0x30] sm:$0xff] %vm1156, %v1028
  %1164 = vst.msk [vmem:[%s5 + $0x38] sm:$0xff] %vm1156, %v1033
  %1165 = vst.msk [vmem:[%s5 + $0x40] sm:$0xff] %vm1156, %v1038
  %1166 = vst.msk [vmem:[%s5 + $0x48] sm:$0xff] %vm1156, %v1043
  %1167 = vst.msk [vmem:[%s5 + $0x50] sm:$0xff] %vm1156, %v1048
  %1168 = vst.msk [vmem:[%s5 + $0x58] sm:$0xff] %vm1156, %v1053
  %1169 = vst.msk [vmem:[%s5 + $0x60] sm:$0xff] %vm1156, %v1058
  %1170 = vst.msk [vmem:[%s5 + $0x68] sm:$0xff] %vm1156, %v1063
  %1171 = vst.msk [vmem:[%s5 + $0x70] sm:$0xff] %vm1156, %v1068
  %1172 = vst.msk [vmem:[%s5 + $0x78] sm:$0xff] %vm1156, %v1073
  %1173 = vst.msk [vmem:[%s5 + $0x80] sm:$0xff] %vm1156, %v1078
  %1174 = vst.msk [vmem:[%s5 + $0x88] sm:$0xff] %vm1156, %v1083
  %1175 = vst.msk [vmem:[%s5 + $0x90] sm:$0xff] %vm1156, %v1088
  %1176 = vst.msk [vmem:[%s5 + $0x98] sm:$0xff] %vm1156, %v1093
  %1177 = vst.msk [vmem:[%s5 + $0xa0] sm:$0xff] %vm1156, %v1098
  %1178 = vst.msk [vmem:[%s5 + $0xa8] sm:$0xff] %vm1156, %v1103
  %1179 = vst.msk [vmem:[%s5 + $0xb0] sm:$0xff] %vm1156, %v1108
  %1180 = vst.msk [vmem:[%s5 + $0xb8] sm:$0xff] %vm1156, %v1113
  %1181 = vst.msk [vmem:[%s5 + $0xc0] sm:$0xff] %vm1156, %v1118
  %1182 = vst.msk [vmem:[%s5 + $0xc8] sm:$0xff] %vm1156, %v1123
  %1183 = vst.msk [vmem:[%s5 + $0xd0] sm:$0xff] %vm1156, %v1128
  %1184 = vst.msk [vmem:[%s5 + $0xd8] sm:$0xff] %vm1156, %v1133
  %1185 = vst.msk [vmem:[%s5 + $0xe0] sm:$0xff] %vm1156, %v1138
  %1186 = vst.msk [vmem:[%s5 + $0xe8] sm:$0xff] %vm1156, %v1143
  %1187 = vst.msk [vmem:[%s5 + $0xf0] sm:$0xff] %vm1156, %v1148
  %1188 = vst.msk [vmem:[%s5 + $0xf8] sm:$0xff] %vm1156, %v1153
  // Predicated region
  $region22: #{tpu_custom_call.1} parent=0 // pred_check
    _
  $region23: #{tpu_custom_call.1} parent=0 // pred_check_branch
    %1190 = sbr.rel (0) target = $region25
  $region24: #{tpu_custom_call.1} parent=0 // pred_region
    _
  $region25: #{tpu_custom_call.1} parent=0 // pred_fallthru
    _
  // Predicated region
  $region26: #{tpu_custom_call.1} parent=0 // pred_check
    _
  $region27: #{tpu_custom_call.1} parent=0 // pred_check_branch
    %1192 = sbr.rel (0) target = $region29
  $region28: #{tpu_custom_call.1} parent=0 // pred_region
    _
  $region29: #{tpu_custom_call.1} parent=0 // pred_fallthru
    _

// kernel: tpu_custom_call.1
$region0: #{tpu_custom_call.1}
  #allocation0 [shape = 'u32[]', space=smem, size = 0x4, offset = 0x4, fixed_abs, tag = 'smem constant byte address 0x4 - core index']
  #allocation1 [shape = 'u32[144,128]{1,0:T(1,128)}', space=vmem, size = 0x12000, scoped, tag = 'internal scratch']
  %s0 = inlined_call_operand.vmem [shape: f32[256,4], index: 0, kind: input, shape index: {}]
  %s1 = inlined_call_operand.vmem [shape: f32[4,128], index: 1, kind: input, shape index: {}]
  %s2 = inlined_call_operand.vmem [shape: f32[1,128], index: 2, kind: input, shape index: {}]
  %s3 = inlined_call_operand.vmem [shape: f32[128,2], index: 3, kind: input, shape index: {}]
  %s4 = inlined_call_operand.vmem [shape: f32[1,2], index: 4, kind: input, shape index: {}]
  %s5 = inlined_call_operand.vmem [shape: f32[256,2], index: 5, kind: output, shape index: {}]
  %s6 = sld [smem:[#allocation0]]
  $region30: #{tpu_custom_call.1} parent=0
    _
  %s8 = ssub.s32 1, %s6
  %s9 = scalar_select 0, %s8, %s6
  // Predicated region
  $region2: #{tpu_custom_call.1} parent=0 // pred_check
    _
  $region3: #{tpu_custom_call.1} parent=0 // pred_check_branch
    %11 = sbr.rel (0) target = $region5
  $region4: #{tpu_custom_call.1} parent=0 // pred_region
    _
  $region5: #{tpu_custom_call.1} parent=0 // pred_fallthru
    _
  // Predicated region
  $region6: #{tpu_custom_call.1} parent=0 // pred_check
    _
  $region7: #{tpu_custom_call.1} parent=0 // pred_check_branch
    %13 = sbr.rel (0) target = $region9
  $region8: #{tpu_custom_call.1} parent=0 // pred_region
    _
  $region9: #{tpu_custom_call.1} parent=0 // pred_fallthru
    _
  // Predicated region
  $region10: #{tpu_custom_call.1} parent=0 // pred_check
    _
  $region11: #{tpu_custom_call.1} parent=0 // pred_check_branch
    %15 = sbr.rel (0) target = $region13
  $region12: #{tpu_custom_call.1} parent=0 // pred_region
    _
  $region13: #{tpu_custom_call.1} parent=0 // pred_fallthru
    _
  // Predicated region
  $region14: #{tpu_custom_call.1} parent=0 // pred_check
    _
  $region15: #{tpu_custom_call.1} parent=0 // pred_check_branch
    %17 = sbr.rel (0) target = $region17
  $region16: #{tpu_custom_call.1} parent=0 // pred_region
    _
  $region17: #{tpu_custom_call.1} parent=0 // pred_fallthru
    _
  // Predicated region
  $region18: #{tpu_custom_call.1} parent=0 // pred_check
    _
  $region19: #{tpu_custom_call.1} parent=0 // pred_check_branch
    %19 = sbr.rel (0) target = $region21
  $region20: #{tpu_custom_call.1} parent=0 // pred_region
    _
  $region21: #{tpu_custom_call.1} parent=0 // pred_fallthru
    _
  %v20 = vld [vmem:[%s0] sm:$0xff]
  %v21 = vld [vmem:[%s0 + $0x8] sm:$0xff]
  %v22 = vld [vmem:[%s0 + $0x10] sm:$0xff]
  %v23 = vld [vmem:[%s0 + $0x18] sm:$0xff]
  %v24 = vld [vmem:[%s0 + $0x20] sm:$0xff]
  %v25 = vld [vmem:[%s0 + $0x28] sm:$0xff]
  %v26 = vld [vmem:[%s0 + $0x30] sm:$0xff]
  %v27 = vld [vmem:[%s0 + $0x38] sm:$0xff]
  %v28 = vld [vmem:[%s0 + $0x40] sm:$0xff]
  %v29 = vld [vmem:[%s0 + $0x48] sm:$0xff]
  %v30 = vld [vmem:[%s0 + $0x50] sm:$0xff]
  %v31 = vld [vmem:[%s0 + $0x58] sm:$0xff]
  %v32 = vld [vmem:[%s0 + $0x60] sm:$0xff]
  %v33 = vld [vmem:[%s0 + $0x68] sm:$0xff]
  %v34 = vld [vmem:[%s0 + $0x70] sm:$0xff]
  %v35 = vld [vmem:[%s0 + $0x78] sm:$0xff]
  %v36 = vld [vmem:[%s0 + $0x80] sm:$0xff]
  %v37 = vld [vmem:[%s0 + $0x88] sm:$0xff]
  %v38 = vld [vmem:[%s0 + $0x90] sm:$0xff]
  %v39 = vld [vmem:[%s0 + $0x98] sm:$0xff]
  %v40 = vld [vmem:[%s0 + $0xa0] sm:$0xff]
  %v41 = vld [vmem:[%s0 + $0xa8] sm:$0xff]
  %v42 = vld [vmem:[%s0 + $0xb0] sm:$0xff]
  %v43 = vld [vmem:[%s0 + $0xb8] sm:$0xff]
  %v44 = vld [vmem:[%s0 + $0xc0] sm:$0xff]
  %v45 = vld [vmem:[%s0 + $0xc8] sm:$0xff]
  %v46 = vld [vmem:[%s0 + $0xd0] sm:$0xff]
  %v47 = vld [vmem:[%s0 + $0xd8] sm:$0xff]
  %v48 = vld [vmem:[%s0 + $0xe0] sm:$0xff]
  %v49 = vld [vmem:[%s0 + $0xe8] sm:$0xff]
  %v50 = vld [vmem:[%s0 + $0xf0] sm:$0xff]
  %v51 = vld [vmem:[%s0 + $0xf8] sm:$0xff]
  %v52 = vld [vmem:[%s1] sm:$0xf]
  %v53 = vld [vmem:[%s2] sm:$0x1]
  %55 = vset.pattern.permute.xlu0 0
  %56 = vperm.xlu0 %55, %v20
  %v57 = vpop.permute.xlu0 %56
  %60 = vset.pattern.permute.xlu0 0
  %61 = vperm.xlu0 %60, %v21
  %v62 = vpop.permute.xlu0 %61
  %65 = vset.pattern.permute.xlu0 0
  %66 = vperm.xlu0 %65, %v22
  %v67 = vpop.permute.xlu0 %66
  %70 = vset.pattern.permute.xlu0 0
  %71 = vperm.xlu0 %70, %v23
  %v72 = vpop.permute.xlu0 %71
  %75 = vset.pattern.permute.xlu0 0
  %76 = vperm.xlu0 %75, %v24
  %v77 = vpop.permute.xlu0 %76
  %80 = vset.pattern.permute.xlu0 0
  %81 = vperm.xlu0 %80, %v25
  %v82 = vpop.permute.xlu0 %81
  %85 = vset.pattern.permute.xlu0 0
  %86 = vperm.xlu0 %85, %v26
  %v87 = vpop.permute.xlu0 %86
  %90 = vset.pattern.permute.xlu0 0
  %91 = vperm.xlu0 %90, %v27
  %v92 = vpop.permute.xlu0 %91
  %95 = vset.pattern.permute.xlu0 0
  %96 = vperm.xlu0 %95, %v28
  %v97 = vpop.permute.xlu0 %96
  %100 = vset.pattern.permute.xlu0 0
  %101 = vperm.xlu0 %100, %v29
  %v102 = vpop.permute.xlu0 %101
  %105 = vset.pattern.permute.xlu0 0
  %106 = vperm.xlu0 %105, %v30
  %v107 = vpop.permute.xlu0 %106
  %110 = vset.pattern.permute.xlu0 0
  %111 = vperm.xlu0 %110, %v31
  %v112 = vpop.permute.xlu0 %111
  %115 = vset.pattern.permute.xlu0 0
  %116 = vperm.xlu0 %115, %v32
  %v117 = vpop.permute.xlu0 %116
  %120 = vset.pattern.permute.xlu0 0
  %121 = vperm.xlu0 %120, %v33
  %v122 = vpop.permute.xlu0 %121
  %125 = vset.pattern.permute.xlu0 0
  %126 = vperm.xlu0 %125, %v34
  %v127 = vpop.permute.xlu0 %126
  %130 = vset.pattern.permute.xlu0 0
  %131 = vperm.xlu0 %130, %v35
  %v132 = vpop.permute.xlu0 %131
  %135 = vset.pattern.permute.xlu0 0
  %136 = vperm.xlu0 %135, %v36
  %v137 = vpop.permute.xlu0 %136
  %140 = vset.pattern.permute.xlu0 0
  %141 = vperm.xlu0 %140, %v37
  %v142 = vpop.permute.xlu0 %141
  %145 = vset.pattern.permute.xlu0 0
  %146 = vperm.xlu0 %145, %v38
  %v147 = vpop.permute.xlu0 %146
  %150 = vset.pattern.permute.xlu0 0
  %151 = vperm.xlu0 %150, %v39
  %v152 = vpop.permute.xlu0 %151
  %155 = vset.pattern.permute.xlu0 0
  %156 = vperm.xlu0 %155, %v40
  %v157 = vpop.permute.xlu0 %156
  %160 = vset.pattern.permute.xlu0 0
  %161 = vperm.xlu0 %160, %v41
  %v162 = vpop.permute.xlu0 %161
  %165 = vset.pattern.permute.xlu0 0
  %166 = vperm.xlu0 %165, %v42
  %v167 = vpop.permute.xlu0 %166
  %170 = vset.pattern.permute.xlu0 0
  %171 = vperm.xlu0 %170, %v43
  %v172 = vpop.permute.xlu0 %171
  %175 = vset.pattern.permute.xlu0 0
  %176 = vperm.xlu0 %175, %v44
  %v177 = vpop.permute.xlu0 %176
  %180 = vset.pattern.permute.xlu0 0
  %181 = vperm.xlu0 %180, %v45
  %v182 = vpop.permute.xlu0 %181
  %185 = vset.pattern.permute.xlu0 0
  %186 = vperm.xlu0 %185, %v46
  %v187 = vpop.permute.xlu0 %186
  %190 = vset.pattern.permute.xlu0 0
  %191 = vperm.xlu0 %190, %v47
  %v192 = vpop.permute.xlu0 %191
  %195 = vset.pattern.permute.xlu0 0
  %196 = vperm.xlu0 %195, %v48
  %v197 = vpop.permute.xlu0 %196
  %200 = vset.pattern.permute.xlu0 0
  %201 = vperm.xlu0 %200, %v49
  %v202 = vpop.permute.xlu0 %201
  %205 = vset.pattern.permute.xlu0 0
  %206 = vperm.xlu0 %205, %v50
  %v207 = vpop.permute.xlu0 %206
  %210 = vset.pattern.permute.xlu0 0
  %211 = vperm.xlu0 %210, %v51
  %v212 = vpop.permute.xlu0 %211
  %v214 = vlaneseq
  %v215 = vshrl.u32 %v214, 7
  %v216 = vsub.s32 0, %v215
  %v217 = vrot.slane %v52, %v216
  %v218 = vmul.f32 %v57, %v217
  %v219 = vmul.f32 %v62, %v217
  %v220 = vmul.f32 %v67, %v217
  %v221 = vmul.f32 %v72, %v217
  %v222 = vmul.f32 %v77, %v217
  %v223 = vmul.f32 %v82, %v217
  %v224 = vmul.f32 %v87, %v217
  %v225 = vmul.f32 %v92, %v217
  %v226 = vmul.f32 %v97, %v217
  %v227 = vmul.f32 %v102, %v217
  %v228 = vmul.f32 %v107, %v217
  %v229 = vmul.f32 %v112, %v217
  %v230 = vmul.f32 %v117, %v217
  %v231 = vmul.f32 %v122, %v217
  %v232 = vmul.f32 %v127, %v217
  %v233 = vmul.f32 %v132, %v217
  %v234 = vmul.f32 %v137, %v217
  %v235 = vmul.f32 %v142, %v217
  %v236 = vmul.f32 %v147, %v217
  %v237 = vmul.f32 %v152, %v217
  %v238 = vmul.f32 %v157, %v217
  %v239 = vmul.f32 %v162, %v217
  %v240 = vmul.f32 %v167, %v217
  %v241 = vmul.f32 %v172, %v217
  %v242 = vmul.f32 %v177, %v217
  %v243 = vmul.f32 %v182, %v217
  %v244 = vmul.f32 %v187, %v217
  %v245 = vmul.f32 %v192, %v217
  %v246 = vmul.f32 %v197, %v217
  %v247 = vmul.f32 %v202, %v217
  %v248 = vmul.f32 %v207, %v217
  %v249 = vmul.f32 %v212, %v217
  %v251 = vlaneseq
  %v252 = vshrl.u32 %v251, 7
  %v253 = vsub.s32 0, %v252
  %v254 = vrot.slane %v53, %v253
  %v256 = vadd.f32 %v254, %v218
  %v257 = vadd.f32 %v254, %v219
  %v258 = vadd.f32 %v254, %v220
  %v259 = vadd.f32 %v254, %v221
  %v260 = vadd.f32 %v254, %v222
  %v261 = vadd.f32 %v254, %v223
  %v262 = vadd.f32 %v254, %v224
  %v263 = vadd.f32 %v254, %v225
  %v264 = vadd.f32 %v254, %v226
  %v265 = vadd.f32 %v254, %v227
  %v266 = vadd.f32 %v254, %v228
  %v267 = vadd.f32 %v254, %v229
  %v268 = vadd.f32 %v254, %v230
  %v269 = vadd.f32 %v254, %v231
  %v270 = vadd.f32 %v254, %v232
  %v271 = vadd.f32 %v254, %v233
  %v272 = vadd.f32 %v254, %v234
  %v273 = vadd.f32 %v254, %v235
  %v274 = vadd.f32 %v254, %v236
  %v275 = vadd.f32 %v254, %v237
  %v276 = vadd.f32 %v254, %v238
  %v277 = vadd.f32 %v254, %v239
  %v278 = vadd.f32 %v254, %v240
  %v279 = vadd.f32 %v254, %v241
  %v280 = vadd.f32 %v254, %v242
  %v281 = vadd.f32 %v254, %v243
  %v282 = vadd.f32 %v254, %v244
  %v283 = vadd.f32 %v254, %v245
  %v284 = vadd.f32 %v254, %v246
  %v285 = vadd.f32 %v254, %v247
  %v286 = vadd.f32 %v254, %v248
  %v287 = vadd.f32 %v254, %v249
  %288 = vset.pattern.permute.xlu0 1
  %289 = vperm.xlu0 %288, %v20
  %v290 = vpop.permute.xlu0 %289
  %292 = vset.pattern.permute.xlu0 1
  %293 = vperm.xlu0 %292, %v21
  %v294 = vpop.permute.xlu0 %293
  %296 = vset.pattern.permute.xlu0 1
  %297 = vperm.xlu0 %296, %v22
  %v298 = vpop.permute.xlu0 %297
  %300 = vset.pattern.permute.xlu0 1
  %301 = vperm.xlu0 %300, %v23
  %v302 = vpop.permute.xlu0 %301
  %304 = vset.pattern.permute.xlu0 1
  %305 = vperm.xlu0 %304, %v24
  %v306 = vpop.permute.xlu0 %305
  %308 = vset.pattern.permute.xlu0 1
  %309 = vperm.xlu0 %308, %v25
  %v310 = vpop.permute.xlu0 %309
  %312 = vset.pattern.permute.xlu0 1
  %313 = vperm.xlu0 %312, %v26
  %v314 = vpop.permute.xlu0 %313
  %316 = vset.pattern.permute.xlu0 1
  %317 = vperm.xlu0 %316, %v27
  %v318 = vpop.permute.xlu0 %317
  %320 = vset.pattern.permute.xlu0 1
  %321 = vperm.xlu0 %320, %v28
  %v322 = vpop.permute.xlu0 %321
  %324 = vset.pattern.permute.xlu0 1
  %325 = vperm.xlu0 %324, %v29
  %v326 = vpop.permute.xlu0 %325
  %328 = vset.pattern.permute.xlu0 1
  %329 = vperm.xlu0 %328, %v30
  %v330 = vpop.permute.xlu0 %329
  %332 = vset.pattern.permute.xlu0 1
  %333 = vperm.xlu0 %332, %v31
  %v334 = vpop.permute.xlu0 %333
  %336 = vset.pattern.permute.xlu0 1
  %337 = vperm.xlu0 %336, %v32
  %v338 = vpop.permute.xlu0 %337
  %340 = vset.pattern.permute.xlu0 1
  %341 = vperm.xlu0 %340, %v33
  %v342 = vpop.permute.xlu0 %341
  %344 = vset.pattern.permute.xlu0 1
  %345 = vperm.xlu0 %344, %v34
  %v346 = vpop.permute.xlu0 %345
  %348 = vset.pattern.permute.xlu0 1
  %349 = vperm.xlu0 %348, %v35
  %v350 = vpop.permute.xlu0 %349
  %352 = vset.pattern.permute.xlu0 1
  %353 = vperm.xlu0 %352, %v36
  %v354 = vpop.permute.xlu0 %353
  %356 = vset.pattern.permute.xlu0 1
  %357 = vperm.xlu0 %356, %v37
  %v358 = vpop.permute.xlu0 %357
  %360 = vset.pattern.permute.xlu0 1
  %361 = vperm.xlu0 %360, %v38
  %v362 = vpop.permute.xlu0 %361
  %364 = vset.pattern.permute.xlu0 1
  %365 = vperm.xlu0 %364, %v39
  %v366 = vpop.permute.xlu0 %365
  %368 = vset.pattern.permute.xlu0 1
  %369 = vperm.xlu0 %368, %v40
  %v370 = vpop.permute.xlu0 %369
  %372 = vset.pattern.permute.xlu0 1
  %373 = vperm.xlu0 %372, %v41
  %v374 = vpop.permute.xlu0 %373
  %376 = vset.pattern.permute.xlu0 1
  %377 = vperm.xlu0 %376, %v42
  %v378 = vpop.permute.xlu0 %377
  %380 = vset.pattern.permute.xlu0 1
  %381 = vperm.xlu0 %380, %v43
  %v382 = vpop.permute.xlu0 %381
  %384 = vset.pattern.permute.xlu0 1
  %385 = vperm.xlu0 %384, %v44
  %v386 = vpop.permute.xlu0 %385
  %388 = vset.pattern.permute.xlu0 1
  %389 = vperm.xlu0 %388, %v45
  %v390 = vpop.permute.xlu0 %389
  %392 = vset.pattern.permute.xlu0 1
  %393 = vperm.xlu0 %392, %v46
  %v394 = vpop.permute.xlu0 %393
  %396 = vset.pattern.permute.xlu0 1
  %397 = vperm.xlu0 %396, %v47
  %v398 = vpop.permute.xlu0 %397
  %400 = vset.pattern.permute.xlu0 1
  %401 = vperm.xlu0 %400, %v48
  %v402 = vpop.permute.xlu0 %401
  %404 = vset.pattern.permute.xlu0 1
  %405 = vperm.xlu0 %404, %v49
  %v406 = vpop.permute.xlu0 %405
  %408 = vset.pattern.permute.xlu0 1
  %409 = vperm.xlu0 %408, %v50
  %v410 = vpop.permute.xlu0 %409
  %412 = vset.pattern.permute.xlu0 1
  %413 = vperm.xlu0 %412, %v51
  %v414 = vpop.permute.xlu0 %413
  %v416 = vlaneseq
  %v417 = vshrl.u32 %v416, 7
  %v418 = vsub.s32 1, %v417
  %v419 = vrot.slane %v52, %v418
  %v420 = vmul.f32 %v290, %v419
  %v421 = vmul.f32 %v294, %v419
  %v422 = vmul.f32 %v298, %v419
  %v423 = vmul.f32 %v302, %v419
  %v424 = vmul.f32 %v306, %v419
  %v425 = vmul.f32 %v310, %v419
  %v426 = vmul.f32 %v314, %v419
  %v427 = vmul.f32 %v318, %v419
  %v428 = vmul.f32 %v322, %v419
  %v429 = vmul.f32 %v326, %v419
  %v430 = vmul.f32 %v330, %v419
  %v431 = vmul.f32 %v334, %v419
  %v432 = vmul.f32 %v338, %v419
  %v433 = vmul.f32 %v342, %v419
  %v434 = vmul.f32 %v346, %v419
  %v435 = vmul.f32 %v350, %v419
  %v436 = vmul.f32 %v354, %v419
  %v437 = vmul.f32 %v358, %v419
  %v438 = vmul.f32 %v362, %v419
  %v439 = vmul.f32 %v366, %v419
  %v440 = vmul.f32 %v370, %v419
  %v441 = vmul.f32 %v374, %v419
  %v442 = vmul.f32 %v378, %v419
  %v443 = vmul.f32 %v382, %v419
  %v444 = vmul.f32 %v386, %v419
  %v445 = vmul.f32 %v390, %v419
  %v446 = vmul.f32 %v394, %v419
  %v447 = vmul.f32 %v398, %v419
  %v448 = vmul.f32 %v402, %v419
  %v449 = vmul.f32 %v406, %v419
  %v450 = vmul.f32 %v410, %v419
  %v451 = vmul.f32 %v414, %v419
  %v452 = vadd.f32 %v256, %v420
  %v453 = vadd.f32 %v257, %v421
  %v454 = vadd.f32 %v258, %v422
  %v455 = vadd.f32 %v259, %v423
  %v456 = vadd.f32 %v260, %v424
  %v457 = vadd.f32 %v261, %v425
  %v458 = vadd.f32 %v262, %v426
  %v459 = vadd.f32 %v263, %v427
  %v460 = vadd.f32 %v264, %v428
  %v461 = vadd.f32 %v265, %v429
  %v462 = vadd.f32 %v266, %v430
  %v463 = vadd.f32 %v267, %v431
  %v464 = vadd.f32 %v268, %v432
  %v465 = vadd.f32 %v269, %v433
  %v466 = vadd.f32 %v270, %v434
  %v467 = vadd.f32 %v271, %v435
  %v468 = vadd.f32 %v272, %v436
  %v469 = vadd.f32 %v273, %v437
  %v470 = vadd.f32 %v274, %v438
  %v471 = vadd.f32 %v275, %v439
  %v472 = vadd.f32 %v276, %v440
  %v473 = vadd.f32 %v277, %v441
  %v474 = vadd.f32 %v278, %v442
  %v475 = vadd.f32 %v279, %v443
  %v476 = vadd.f32 %v280, %v444
  %v477 = vadd.f32 %v281, %v445
  %v478 = vadd.f32 %v282, %v446
  %v479 = vadd.f32 %v283, %v447
  %v480 = vadd.f32 %v284, %v448
  %v481 = vadd.f32 %v285, %v449
  %v482 = vadd.f32 %v286, %v450
  %v483 = vadd.f32 %v287, %v451
  %484 = vset.pattern.permute.xlu0 2
  %485 = vperm.xlu0 %484, %v20
  %v486 = vpop.permute.xlu0 %485
  %488 = vset.pattern.permute.xlu0 2
  %489 = vperm.xlu0 %488, %v21
  %v490 = vpop.permute.xlu0 %489
  %492 = vset.pattern.permute.xlu0 2
  %493 = vperm.xlu0 %492, %v22
  %v494 = vpop.permute.xlu0 %493
  %496 = vset.pattern.permute.xlu0 2
  %497 = vperm.xlu0 %496, %v23
  %v498 = vpop.permute.xlu0 %497
  %500 = vset.pattern.permute.xlu0 2
  %501 = vperm.xlu0 %500, %v24
  %v502 = vpop.permute.xlu0 %501
  %504 = vset.pattern.permute.xlu0 2
  %505 = vperm.xlu0 %504, %v25
  %v506 = vpop.permute.xlu0 %505
  %508 = vset.pattern.permute.xlu0 2
  %509 = vperm.xlu0 %508, %v26
  %v510 = vpop.permute.xlu0 %509
  %512 = vset.pattern.permute.xlu0 2
  %513 = vperm.xlu0 %512, %v27
  %v514 = vpop.permute.xlu0 %513
  %516 = vset.pattern.permute.xlu0 2
  %517 = vperm.xlu0 %516, %v28
  %v518 = vpop.permute.xlu0 %517
  %520 = vset.pattern.permute.xlu0 2
  %521 = vperm.xlu0 %520, %v29
  %v522 = vpop.permute.xlu0 %521
  %524 = vset.pattern.permute.xlu0 2
  %525 = vperm.xlu0 %524, %v30
  %v526 = vpop.permute.xlu0 %525
  %528 = vset.pattern.permute.xlu0 2
  %529 = vperm.xlu0 %528, %v31
  %v530 = vpop.permute.xlu0 %529
  %532 = vset.pattern.permute.xlu0 2
  %533 = vperm.xlu0 %532, %v32
  %v534 = vpop.permute.xlu0 %533
  %536 = vset.pattern.permute.xlu0 2
  %537 = vperm.xlu0 %536, %v33
  %v538 = vpop.permute.xlu0 %537
  %540 = vset.pattern.permute.xlu0 2
  %541 = vperm.xlu0 %540, %v34
  %v542 = vpop.permute.xlu0 %541
  %544 = vset.pattern.permute.xlu0 2
  %545 = vperm.xlu0 %544, %v35
  %v546 = vpop.permute.xlu0 %545
  %548 = vset.pattern.permute.xlu0 2
  %549 = vperm.xlu0 %548, %v36
  %v550 = vpop.permute.xlu0 %549
  %552 = vset.pattern.permute.xlu0 2
  %553 = vperm.xlu0 %552, %v37
  %v554 = vpop.permute.xlu0 %553
  %556 = vset.pattern.permute.xlu0 2
  %557 = vperm.xlu0 %556, %v38
  %v558 = vpop.permute.xlu0 %557
  %560 = vset.pattern.permute.xlu0 2
  %561 = vperm.xlu0 %560, %v39
  %v562 = vpop.permute.xlu0 %561
  %564 = vset.pattern.permute.xlu0 2
  %565 = vperm.xlu0 %564, %v40
  %v566 = vpop.permute.xlu0 %565
  %568 = vset.pattern.permute.xlu0 2
  %569 = vperm.xlu0 %568, %v41
  %v570 = vpop.permute.xlu0 %569
  %572 = vset.pattern.permute.xlu0 2
  %573 = vperm.xlu0 %572, %v42
  %v574 = vpop.permute.xlu0 %573
  %576 = vset.pattern.permute.xlu0 2
  %577 = vperm.xlu0 %576, %v43
  %v578 = vpop.permute.xlu0 %577
  %580 = vset.pattern.permute.xlu0 2
  %581 = vperm.xlu0 %580, %v44
  %v582 = vpop.permute.xlu0 %581
  %584 = vset.pattern.permute.xlu0 2
  %585 = vperm.xlu0 %584, %v45
  %v586 = vpop.permute.xlu0 %585
  %588 = vset.pattern.permute.xlu0 2
  %589 = vperm.xlu0 %588, %v46
  %v590 = vpop.permute.xlu0 %589
  %592 = vset.pattern.permute.xlu0 2
  %593 = vperm.xlu0 %592, %v47
  %v594 = vpop.permute.xlu0 %593
  %596 = vset.pattern.permute.xlu0 2
  %597 = vperm.xlu0 %596, %v48
  %v598 = vpop.permute.xlu0 %597
  %600 = vset.pattern.permute.xlu0 2
  %601 = vperm.xlu0 %600, %v49
  %v602 = vpop.permute.xlu0 %601
  %604 = vset.pattern.permute.xlu0 2
  %605 = vperm.xlu0 %604, %v50
  %v606 = vpop.permute.xlu0 %605
  %608 = vset.pattern.permute.xlu0 2
  %609 = vperm.xlu0 %608, %v51
  %v610 = vpop.permute.xlu0 %609
  %v612 = vlaneseq
  %v613 = vshrl.u32 %v612, 7
  %v614 = vsub.s32 2, %v613
  %v615 = vrot.slane %v52, %v614
  %v616 = vmul.f32 %v486, %v615
  %v617 = vmul.f32 %v490, %v615
  %v618 = vmul.f32 %v494, %v615
  %v619 = vmul.f32 %v498, %v615
  %v620 = vmul.f32 %v502, %v615
  %v621 = vmul.f32 %v506, %v615
  %v622 = vmul.f32 %v510, %v615
  %v623 = vmul.f32 %v514, %v615
  %v624 = vmul.f32 %v518, %v615
  %v625 = vmul.f32 %v522, %v615
  %v626 = vmul.f32 %v526, %v615
  %v627 = vmul.f32 %v530, %v615
  %v628 = vmul.f32 %v534, %v615
  %v629 = vmul.f32 %v538, %v615
  %v630 = vmul.f32 %v542, %v615
  %v631 = vmul.f32 %v546, %v615
  %v632 = vmul.f32 %v550, %v615
  %v633 = vmul.f32 %v554, %v615
  %v634 = vmul.f32 %v558, %v615
  %v635 = vmul.f32 %v562, %v615
  %v636 = vmul.f32 %v566, %v615
  %v637 = vmul.f32 %v570, %v615
  %v638 = vmul.f32 %v574, %v615
  %v639 = vmul.f32 %v578, %v615
  %v640 = vmul.f32 %v582, %v615
  %v641 = vmul.f32 %v586, %v615
  %v642 = vmul.f32 %v590, %v615
  %v643 = vmul.f32 %v594, %v615
  %v644 = vmul.f32 %v598, %v615
  %v645 = vmul.f32 %v602, %v615
  %v646 = vmul.f32 %v606, %v615
  %v647 = vmul.f32 %v610, %v615
  %v648 = vadd.f32 %v452, %v616
  %v649 = vadd.f32 %v453, %v617
  %v650 = vadd.f32 %v454, %v618
  %v651 = vadd.f32 %v455, %v619
  %v652 = vadd.f32 %v456, %v620
  %v653 = vadd.f32 %v457, %v621
  %v654 = vadd.f32 %v458, %v622
  %v655 = vadd.f32 %v459, %v623
  %v656 = vadd.f32 %v460, %v624
  %v657 = vadd.f32 %v461, %v625
  %v658 = vadd.f32 %v462, %v626
  %v659 = vadd.f32 %v463, %v627
  %v660 = vadd.f32 %v464, %v628
  %v661 = vadd.f32 %v465, %v629
  %v662 = vadd.f32 %v466, %v630
  %v663 = vadd.f32 %v467, %v631
  %v664 = vadd.f32 %v468, %v632
  %v665 = vadd.f32 %v469, %v633
  %v666 = vadd.f32 %v470, %v634
  %v667 = vadd.f32 %v471, %v635
  %v668 = vadd.f32 %v472, %v636
  %v669 = vadd.f32 %v473, %v637
  %v670 = vadd.f32 %v474, %v638
  %v671 = vadd.f32 %v475, %v639
  %v672 = vadd.f32 %v476, %v640
  %v673 = vadd.f32 %v477, %v641
  %v674 = vadd.f32 %v478, %v642
  %v675 = vadd.f32 %v479, %v643
  %v676 = vadd.f32 %v480, %v644
  %v677 = vadd.f32 %v481, %v645
  %v678 = vadd.f32 %v482, %v646
  %v679 = vadd.f32 %v483, %v647
  %680 = vset.pattern.permute.xlu0 3
  %681 = vperm.xlu0 %680, %v20
  %v682 = vpop.permute.xlu0 %681
  %684 = vset.pattern.permute.xlu0 3
  %685 = vperm.xlu0 %684, %v21
  %v686 = vpop.permute.xlu0 %685
  %688 = vset.pattern.permute.xlu0 3
  %689 = vperm.xlu0 %688, %v22
  %v690 = vpop.permute.xlu0 %689
  %692 = vset.pattern.permute.xlu0 3
  %693 = vperm.xlu0 %692, %v23
  %v694 = vpop.permute.xlu0 %693
  %696 = vset.pattern.permute.xlu0 3
  %697 = vperm.xlu0 %696, %v24
  %v698 = vpop.permute.xlu0 %697
  %700 = vset.pattern.permute.xlu0 3
  %701 = vperm.xlu0 %700, %v25
  %v702 = vpop.permute.xlu0 %701
  %704 = vset.pattern.permute.xlu0 3
  %705 = vperm.xlu0 %704, %v26
  %v706 = vpop.permute.xlu0 %705
  %708 = vset.pattern.permute.xlu0 3
  %709 = vperm.xlu0 %708, %v27
  %v710 = vpop.permute.xlu0 %709
  %712 = vset.pattern.permute.xlu0 3
  %713 = vperm.xlu0 %712, %v28
  %v714 = vpop.permute.xlu0 %713
  %716 = vset.pattern.permute.xlu0 3
  %717 = vperm.xlu0 %716, %v29
  %v718 = vpop.permute.xlu0 %717
  %720 = vset.pattern.permute.xlu0 3
  %721 = vperm.xlu0 %720, %v30
  %v722 = vpop.permute.xlu0 %721
  %724 = vset.pattern.permute.xlu0 3
  %725 = vperm.xlu0 %724, %v31
  %v726 = vpop.permute.xlu0 %725
  %728 = vset.pattern.permute.xlu0 3
  %729 = vperm.xlu0 %728, %v32
  %v730 = vpop.permute.xlu0 %729
  %732 = vset.pattern.permute.xlu0 3
  %733 = vperm.xlu0 %732, %v33
  %v734 = vpop.permute.xlu0 %733
  %736 = vset.pattern.permute.xlu0 3
  %737 = vperm.xlu0 %736, %v34
  %v738 = vpop.permute.xlu0 %737
  %740 = vset.pattern.permute.xlu0 3
  %741 = vperm.xlu0 %740, %v35
  %v742 = vpop.permute.xlu0 %741
  %744 = vset.pattern.permute.xlu0 3
  %745 = vperm.xlu0 %744, %v36
  %v746 = vpop.permute.xlu0 %745
  %748 = vset.pattern.permute.xlu0 3
  %749 = vperm.xlu0 %748, %v37
  %v750 = vpop.permute.xlu0 %749
  %752 = vset.pattern.permute.xlu0 3
  %753 = vperm.xlu0 %752, %v38
  %v754 = vpop.permute.xlu0 %753
  %756 = vset.pattern.permute.xlu0 3
  %757 = vperm.xlu0 %756, %v39
  %v758 = vpop.permute.xlu0 %757
  %760 = vset.pattern.permute.xlu0 3
  %761 = vperm.xlu0 %760, %v40
  %v762 = vpop.permute.xlu0 %761
  %764 = vset.pattern.permute.xlu0 3
  %765 = vperm.xlu0 %764, %v41
  %v766 = vpop.permute.xlu0 %765
  %768 = vset.pattern.permute.xlu0 3
  %769 = vperm.xlu0 %768, %v42
  %v770 = vpop.permute.xlu0 %769
  %772 = vset.pattern.permute.xlu0 3
  %773 = vperm.xlu0 %772, %v43
  %v774 = vpop.permute.xlu0 %773
  %776 = vset.pattern.permute.xlu0 3
  %777 = vperm.xlu0 %776, %v44
  %v778 = vpop.permute.xlu0 %777
  %780 = vset.pattern.permute.xlu0 3
  %781 = vperm.xlu0 %780, %v45
  %v782 = vpop.permute.xlu0 %781
  %784 = vset.pattern.permute.xlu0 3
  %785 = vperm.xlu0 %784, %v46
  %v786 = vpop.permute.xlu0 %785
  %788 = vset.pattern.permute.xlu0 3
  %789 = vperm.xlu0 %788, %v47
  %v790 = vpop.permute.xlu0 %789
  %792 = vset.pattern.permute.xlu0 3
  %793 = vperm.xlu0 %792, %v48
  %v794 = vpop.permute.xlu0 %793
  %796 = vset.pattern.permute.xlu0 3
  %797 = vperm.xlu0 %796, %v49
  %v798 = vpop.permute.xlu0 %797
  %800 = vset.pattern.permute.xlu0 3
  %801 = vperm.xlu0 %800, %v50
  %v802 = vpop.permute.xlu0 %801
  %804 = vset.pattern.permute.xlu0 3
  %805 = vperm.xlu0 %804, %v51
  %v806 = vpop.permute.xlu0 %805
  %v808 = vlaneseq
  %v809 = vshrl.u32 %v808, 7
  %v810 = vsub.s32 3, %v809
  %v811 = vrot.slane %v52, %v810
  %v812 = vmul.f32 %v682, %v811
  %v813 = vmul.f32 %v686, %v811
  %v814 = vmul.f32 %v690, %v811
  %v815 = vmul.f32 %v694, %v811
  %v816 = vmul.f32 %v698, %v811
  %v817 = vmul.f32 %v702, %v811
  %v818 = vmul.f32 %v706, %v811
  %v819 = vmul.f32 %v710, %v811
  %v820 = vmul.f32 %v714, %v811
  %v821 = vmul.f32 %v718, %v811
  %v822 = vmul.f32 %v722, %v811
  %v823 = vmul.f32 %v726, %v811
  %v824 = vmul.f32 %v730, %v811
  %v825 = vmul.f32 %v734, %v811
  %v826 = vmul.f32 %v738, %v811
  %v827 = vmul.f32 %v742, %v811
  %v828 = vmul.f32 %v746, %v811
  %v829 = vmul.f32 %v750, %v811
  %v830 = vmul.f32 %v754, %v811
  %v831 = vmul.f32 %v758, %v811
  %v832 = vmul.f32 %v762, %v811
  %v833 = vmul.f32 %v766, %v811
  %v834 = vmul.f32 %v770, %v811
  %v835 = vmul.f32 %v774, %v811
  %v836 = vmul.f32 %v778, %v811
  %v837 = vmul.f32 %v782, %v811
  %v838 = vmul.f32 %v786, %v811
  %v839 = vmul.f32 %v790, %v811
  %v840 = vmul.f32 %v794, %v811
  %v841 = vmul.f32 %v798, %v811
  %v842 = vmul.f32 %v802, %v811
  %v843 = vmul.f32 %v806, %v811
  %v844 = vadd.f32 %v648, %v812
  %v845 = vadd.f32 %v649, %v813
  %v846 = vadd.f32 %v650, %v814
  %v847 = vadd.f32 %v651, %v815
  %v848 = vadd.f32 %v652, %v816
  %v849 = vadd.f32 %v653, %v817
  %v850 = vadd.f32 %v654, %v818
  %v851 = vadd.f32 %v655, %v819
  %v852 = vadd.f32 %v656, %v820
  %v853 = vadd.f32 %v657, %v821
  %v854 = vadd.f32 %v658, %v822
  %v855 = vadd.f32 %v659, %v823
  %v856 = vadd.f32 %v660, %v824
  %v857 = vadd.f32 %v661, %v825
  %v858 = vadd.f32 %v662, %v826
  %v859 = vadd.f32 %v663, %v827
  %v860 = vadd.f32 %v664, %v828
  %v861 = vadd.f32 %v665, %v829
  %v862 = vadd.f32 %v666, %v830
  %v863 = vadd.f32 %v667, %v831
  %v864 = vadd.f32 %v668, %v832
  %v865 = vadd.f32 %v669, %v833
  %v866 = vadd.f32 %v670, %v834
  %v867 = vadd.f32 %v671, %v835
  %v868 = vadd.f32 %v672, %v836
  %v869 = vadd.f32 %v673, %v837
  %v870 = vadd.f32 %v674, %v838
  %v871 = vadd.f32 %v675, %v839
  %v872 = vadd.f32 %v676, %v840
  %v873 = vadd.f32 %v677, %v841
  %v874 = vadd.f32 %v678, %v842
  %v875 = vadd.f32 %v679, %v843
  %v876 = vmax.f32 %v844, 0.0
  %v877 = vmax.f32 %v845, 0.0
  %v878 = vmax.f32 %v846, 0.0
  %v879 = vmax.f32 %v847, 0.0
  %v880 = vmax.f32 %v848, 0.0
  %v881 = vmax.f32 %v849, 0.0
  %v882 = vmax.f32 %v850, 0.0
  %v883 = vmax.f32 %v851, 0.0
  %v884 = vmax.f32 %v852, 0.0
  %v885 = vmax.f32 %v853, 0.0
  %v886 = vmax.f32 %v854, 0.0
  %v887 = vmax.f32 %v855, 0.0
  %v888 = vmax.f32 %v856, 0.0
  %v889 = vmax.f32 %v857, 0.0
  %v890 = vmax.f32 %v858, 0.0
  %v891 = vmax.f32 %v859, 0.0
  %v892 = vmax.f32 %v860, 0.0
  %v893 = vmax.f32 %v861, 0.0
  %v894 = vmax.f32 %v862, 0.0
  %v895 = vmax.f32 %v863, 0.0
  %v896 = vmax.f32 %v864, 0.0
  %v897 = vmax.f32 %v865, 0.0
  %v898 = vmax.f32 %v866, 0.0
  %v899 = vmax.f32 %v867, 0.0
  %v900 = vmax.f32 %v868, 0.0
  %v901 = vmax.f32 %v869, 0.0
  %v902 = vmax.f32 %v870, 0.0
  %v903 = vmax.f32 %v871, 0.0
  %v904 = vmax.f32 %v872, 0.0
  %v905 = vmax.f32 %v873, 0.0
  %v906 = vmax.f32 %v874, 0.0
  %v907 = vmax.f32 %v875, 0.0
  %v908 = vld [vmem:[%s3] sm:$0xff]
  %v909 = vld [vmem:[%s3 + $0x8] sm:$0xff]
  %v910 = vld [vmem:[%s3 + $0x10] sm:$0xff]
  %v911 = vld [vmem:[%s3 + $0x18] sm:$0xff]
  %v912 = vld [vmem:[%s3 + $0x20] sm:$0xff]
  %v913 = vld [vmem:[%s3 + $0x28] sm:$0xff]
  %v914 = vld [vmem:[%s3 + $0x30] sm:$0xff]
  %v915 = vld [vmem:[%s3 + $0x38] sm:$0xff]
  %v916 = vld [vmem:[%s3 + $0x40] sm:$0xff]
  %v917 = vld [vmem:[%s3 + $0x48] sm:$0xff]
  %v918 = vld [vmem:[%s3 + $0x50] sm:$0xff]
  %v919 = vld [vmem:[%s3 + $0x58] sm:$0xff]
  %v920 = vld [vmem:[%s3 + $0x60] sm:$0xff]
  %v921 = vld [vmem:[%s3 + $0x68] sm:$0xff]
  %v922 = vld [vmem:[%s3 + $0x70] sm:$0xff]
  %v923 = vld [vmem:[%s3 + $0x78] sm:$0xff]
  %v924 = vld [vmem:[%s4] sm:$0x1]
  %v926 = vlaneseq
  %v927 = vshrl.u32 %v926, 7
  %v928 = vsub.s32 0, %v927
  %v929 = vrot.slane %v924, %v928
  %931 = vmatprep.subr.mxu0 0.0
  %932 = vmatpush1.msra.mxu0 %v908
  %933 = vmatprep.subr.mxu0 0.0
  %934 = vmatpush1.msra.mxu0 %v909
  %935 = vmatprep.subr.mxu0 0.0
  %936 = vmatpush1.msra.mxu0 %v910
  %937 = vmatprep.subr.mxu0 0.0
  %938 = vmatpush1.msra.mxu0 %v911
  %939 = vmatprep.subr.mxu0 0.0
  %940 = vmatpush1.msra.mxu0 %v912
  %941 = vmatprep.subr.mxu0 0.0
  %942 = vmatpush1.msra.mxu0 %v913
  %943 = vmatprep.subr.mxu0 0.0
  %944 = vmatpush1.msra.mxu0 %v914
  %945 = vmatprep.subr.mxu0 0.0
  %946 = vmatpush1.msra.mxu0 %v915
  %947 = vmatprep.subr.mxu0 0.0
  %948 = vmatpush1.msra.mxu0 %v916
  %949 = vmatprep.subr.mxu0 0.0
  %950 = vmatpush1.msra.mxu0 %v917
  %951 = vmatprep.subr.mxu0 0.0
  %952 = vmatpush1.msra.mxu0 %v918
  %953 = vmatprep.subr.mxu0 0.0
  %954 = vmatpush1.msra.mxu0 %v919
  %955 = vmatprep.subr.mxu0 0.0
  %956 = vmatpush1.msra.mxu0 %v920
  %957 = vmatprep.subr.mxu0 0.0
  %958 = vmatpush1.msra.mxu0 %v921
  %959 = vmatprep.subr.mxu0 0.0
  %960 = vmatpush1.msra.mxu0 %v922
  %961 = vmatprep.subr.mxu0 0.0
  %962 = vmatpush1.msra.mxu0 %v923
  %963 = vmatprep.subr.mxu0 0.0
  %964 = vmatpush1.msra.mxu0 0.0
  %965 = vmatprep.subr.mxu0 0.0
  %966 = vmatpush1.msra.mxu0 0.0
  %967 = vmatprep.subr.mxu0 0.0
  %968 = vmatpush1.msra.mxu0 0.0
  %969 = vmatprep.subr.mxu0 0.0
  %970 = vmatpush1.msra.mxu0 0.0
  %971 = vmatprep.subr.mxu0 0.0
  %972 = vmatpush1.msra.mxu0 0.0
  %973 = vmatprep.subr.mxu0 0.0
  %974 = vmatpush1.msra.mxu0 0.0
  %975 = vmatprep.subr.mxu0 0.0
  %976 = vmatpush1.msra.mxu0 0.0
  %977 = vmatprep.subr.mxu0 0.0
  %978 = vmatpush1.msra.mxu0 0.0
  %979 = vmatprep.subr.mxu0 0.0
  %980 = vmatpush1.msra.mxu0 0.0
  %981 = vmatprep.subr.mxu0 0.0
  %982 = vmatpush1.msra.mxu0 0.0
  %983 = vmatprep.subr.mxu0 0.0
  %984 = vmatpush1.msra.mxu0 0.0
  %985 = vmatprep.subr.mxu0 0.0
  %986 = vmatpush1.msra.mxu0 0.0
  %987 = vmatprep.subr.mxu0 0.0
  %988 = vmatpush1.msra.mxu0 0.0
  %989 = vmatprep.subr.mxu0 0.0
  %990 = vmatpush1.msra.mxu0 0.0
  %991 = vmatprep.subr.mxu0 0.0
  %992 = vmatpush1.msra.mxu0 0.0
  %993 = vmatprep.subr.mxu0 0.0
  %994 = vmatpush1.msra.mxu0 0.0
  %995 = vmatprep.mubr.f32.mxu0 0.0
  %996 = vmatmul.mubr.f32.gmra.mrb[0].mxu0 %v876
  %v997 = vpop.f32.mrb[0].mxu0
  %v998 = vadd.f32 %v929, %v997
  %v999 = vpop.f32.mrb[0].mxu0
  %1000 = vmatprep.mubr.f32.mxu0 0.0
  %1001 = vmatmul.mubr.f32.gmra.mrb[0].mxu0 %v877
  %v1002 = vpop.f32.mrb[0].mxu0
  %v1003 = vadd.f32 %v929, %v1002
  %v1004 = vpop.f32.mrb[0].mxu0
  %1005 = vmatprep.mubr.f32.mxu0 0.0
  %1006 = vmatmul.mubr.f32.gmra.mrb[0].mxu0 %v878
  %v1007 = vpop.f32.mrb[0].mxu0
  %v1008 = vadd.f32 %v929, %v1007
  %v1009 = vpop.f32.mrb[0].mxu0
  %1010 = vmatprep.mubr.f32.mxu0 0.0
  %1011 = vmatmul.mubr.f32.gmra.mrb[0].mxu0 %v879
  %v1012 = vpop.f32.mrb[0].mxu0
  %v1013 = vadd.f32 %v929, %v1012
  %v1014 = vpop.f32.mrb[0].mxu0
  %1015 = vmatprep.mubr.f32.mxu0 0.0
  %1016 = vmatmul.mubr.f32.gmra.mrb[0].mxu0 %v880
  %v1017 = vpop.f32.mrb[0].mxu0
  %v1018 = vadd.f32 %v929, %v1017
  %v1019 = vpop.f32.mrb[0].mxu0
  %1020 = vmatprep.mubr.f32.mxu0 0.0
  %1021 = vmatmul.mubr.f32.gmra.mrb[0].mxu0 %v881
  %v1022 = vpop.f32.mrb[0].mxu0
  %v1023 = vadd.f32 %v929, %v1022
  %v1024 = vpop.f32.mrb[0].mxu0
  %1025 = vmatprep.mubr.f32.mxu0 0.0
  %1026 = vmatmul.mubr.f32.gmra.mrb[0].mxu0 %v882
  %v1027 = vpop.f32.mrb[0].mxu0
  %v1028 = vadd.f32 %v929, %v1027
  %v1029 = vpop.f32.mrb[0].mxu0
  %1030 = vmatprep.mubr.f32.mxu0 0.0
  %1031 = vmatmul.mubr.f32.gmra.mrb[0].mxu0 %v883
  %v1032 = vpop.f32.mrb[0].mxu0
  %v1033 = vadd.f32 %v929, %v1032
  %v1034 = vpop.f32.mrb[0].mxu0
  %1035 = vmatprep.mubr.f32.mxu0 0.0
  %1036 = vmatmul.mubr.f32.gmra.mrb[0].mxu0 %v884
  %v1037 = vpop.f32.mrb[0].mxu0
  %v1038 = vadd.f32 %v929, %v1037
  %v1039 = vpop.f32.mrb[0].mxu0
  %1040 = vmatprep.mubr.f32.mxu0 0.0
  %1041 = vmatmul.mubr.f32.gmra.mrb[0].mxu0 %v885
  %v1042 = vpop.f32.mrb[0].mxu0
  %v1043 = vadd.f32 %v929, %v1042
  %v1044 = vpop.f32.mrb[0].mxu0
  %1045 = vmatprep.mubr.f32.mxu0 0.0
  %1046 = vmatmul.mubr.f32.gmra.mrb[0].mxu0 %v886
  %v1047 = vpop.f32.mrb[0].mxu0
  %v1048 = vadd.f32 %v929, %v1047
  %v1049 = vpop.f32.mrb[0].mxu0
  %1050 = vmatprep.mubr.f32.mxu0 0.0
  %1051 = vmatmul.mubr.f32.gmra.mrb[0].mxu0 %v887
  %v1052 = vpop.f32.mrb[0].mxu0
  %v1053 = vadd.f32 %v929, %v1052
  %v1054 = vpop.f32.mrb[0].mxu0
  %1055 = vmatprep.mubr.f32.mxu0 0.0
  %1056 = vmatmul.mubr.f32.gmra.mrb[0].mxu0 %v888
  %v1057 = vpop.f32.mrb[0].mxu0
  %v1058 = vadd.f32 %v929, %v1057
  %v1059 = vpop.f32.mrb[0].mxu0
  %1060 = vmatprep.mubr.f32.mxu0 0.0
  %1061 = vmatmul.mubr.f32.gmra.mrb[0].mxu0 %v889
  %v1062 = vpop.f32.mrb[0].mxu0
  %v1063 = vadd.f32 %v929, %v1062
  %v1064 = vpop.f32.mrb[0].mxu0
  %1065 = vmatprep.mubr.f32.mxu0 0.0
  %1066 = vmatmul.mubr.f32.gmra.mrb[0].mxu0 %v890
  %v1067 = vpop.f32.mrb[0].mxu0
  %v1068 = vadd.f32 %v929, %v1067
  %v1069 = vpop.f32.mrb[0].mxu0
  %1070 = vmatprep.mubr.f32.mxu0 0.0
  %1071 = vmatmul.mubr.f32.gmra.mrb[0].mxu0 %v891
  %v1072 = vpop.f32.mrb[0].mxu0
  %v1073 = vadd.f32 %v929, %v1072
  %v1074 = vpop.f32.mrb[0].mxu0
  %1075 = vmatprep.mubr.f32.mxu0 0.0
  %1076 = vmatmul.mubr.f32.gmra.mrb[0].mxu0 %v892
  %v1077 = vpop.f32.mrb[0].mxu0
  %v1078 = vadd.f32 %v929, %v1077
  %v1079 = vpop.f32.mrb[0].mxu0
  %1080 = vmatprep.mubr.f32.mxu0 0.0
  %1081 = vmatmul.mubr.f32.gmra.mrb[0].mxu0 %v893
  %v1082 = vpop.f32.mrb[0].mxu0
  %v1083 = vadd.f32 %v929, %v1082
  %v1084 = vpop.f32.mrb[0].mxu0
  %1085 = vmatprep.mubr.f32.mxu0 0.0
  %1086 = vmatmul.mubr.f32.gmra.mrb[0].mxu0 %v894
  %v1087 = vpop.f32.mrb[0].mxu0
  %v1088 = vadd.f32 %v929, %v1087
  %v1089 = vpop.f32.mrb[0].mxu0
  %1090 = vmatprep.mubr.f32.mxu0 0.0
  %1091 = vmatmul.mubr.f32.gmra.mrb[0].mxu0 %v895
  %v1092 = vpop.f32.mrb[0].mxu0
  %v1093 = vadd.f32 %v929, %v1092
  %v1094 = vpop.f32.mrb[0].mxu0
  %1095 = vmatprep.mubr.f32.mxu0 0.0
  %1096 = vmatmul.mubr.f32.gmra.mrb[0].mxu0 %v896
  %v1097 = vpop.f32.mrb[0].mxu0
  %v1098 = vadd.f32 %v929, %v1097
  %v1099 = vpop.f32.mrb[0].mxu0
  %1100 = vmatprep.mubr.f32.mxu0 0.0
  %1101 = vmatmul.mubr.f32.gmra.mrb[0].mxu0 %v897
  %v1102 = vpop.f32.mrb[0].mxu0
  %v1103 = vadd.f32 %v929, %v1102
  %v1104 = vpop.f32.mrb[0].mxu0
  %1105 = vmatprep.mubr.f32.mxu0 0.0
  %1106 = vmatmul.mubr.f32.gmra.mrb[0].mxu0 %v898
  %v1107 = vpop.f32.mrb[0].mxu0
  %v1108 = vadd.f32 %v929, %v1107
  %v1109 = vpop.f32.mrb[0].mxu0
  %1110 = vmatprep.mubr.f32.mxu0 0.0
  %1111 = vmatmul.mubr.f32.gmra.mrb[0].mxu0 %v899
  %v1112 = vpop.f32.mrb[0].mxu0
  %v1113 = vadd.f32 %v929, %v1112
  %v1114 = vpop.f32.mrb[0].mxu0
  %1115 = vmatprep.mubr.f32.mxu0 0.0
  %1116 = vmatmul.mubr.f32.gmra.mrb[0].mxu0 %v900
  %v1117 = vpop.f32.mrb[0].mxu0
  %v1118 = vadd.f32 %v929, %v1117
  %v1119 = vpop.f32.mrb[0].mxu0
  %1120 = vmatprep.mubr.f32.mxu0 0.0
  %1121 = vmatmul.mubr.f32.gmra.mrb[0].mxu0 %v901
  %v1122 = vpop.f32.mrb[0].mxu0
  %v1123 = vadd.f32 %v929, %v1122
  %v1124 = vpop.f32.mrb[0].mxu0
  %1125 = vmatprep.mubr.f32.mxu0 0.0
  %1126 = vmatmul.mubr.f32.gmra.mrb[0].mxu0 %v902
  %v1127 = vpop.f32.mrb[0].mxu0
  %v1128 = vadd.f32 %v929, %v1127
  %v1129 = vpop.f32.mrb[0].mxu0
  %1130 = vmatprep.mubr.f32.mxu0 0.0
  %1131 = vmatmul.mubr.f32.gmra.mrb[0].mxu0 %v903
  %v1132 = vpop.f32.mrb[0].mxu0
  %v1133 = vadd.f32 %v929, %v1132
  %v1134 = vpop.f32.mrb[0].mxu0
  %1135 = vmatprep.mubr.f32.mxu0 0.0
  %1136 = vmatmul.mubr.f32.gmra.mrb[0].mxu0 %v904
  %v1137 = vpop.f32.mrb[0].mxu0
  %v1138 = vadd.f32 %v929, %v1137
  %v1139 = vpop.f32.mrb[0].mxu0
  %1140 = vmatprep.mubr.f32.mxu0 0.0
  %1141 = vmatmul.mubr.f32.gmra.mrb[0].mxu0 %v905
  %v1142 = vpop.f32.mrb[0].mxu0
  %v1143 = vadd.f32 %v929, %v1142
  %v1144 = vpop.f32.mrb[0].mxu0
  %1145 = vmatprep.mubr.f32.mxu0 0.0
  %1146 = vmatmul.mubr.f32.gmra.mrb[0].mxu0 %v906
  %v1147 = vpop.f32.mrb[0].mxu0
  %v1148 = vadd.f32 %v929, %v1147
  %v1149 = vpop.f32.mrb[0].mxu0
  %1150 = vmatprep.mubr.f32.mxu0 0.0
  %1151 = vmatmul.mubr.f32.gmra.mrb[0].mxu0 %v907
  %v1152 = vpop.f32.mrb[0].mxu0
  %v1153 = vadd.f32 %v929, %v1152
  %v1154 = vpop.f32.mrb[0].mxu0
  %1155 = vdwg.mxu0
  %vm1156 = vcmask 15360
  %1157 = vst.msk [vmem:[%s5] sm:$0xff] %vm1156, %v998
  %1158 = vst.msk [vmem:[%s5 + $0x8] sm:$0xff] %vm1156, %v1003
  %1159 = vst.msk [vmem:[%s5 + $0x10] sm:$0xff] %vm1156, %v1008
  %1160 = vst.msk [vmem:[%s5 + $0x18] sm:$0xff] %vm1156, %v1013
  %1161 = vst.msk [vmem:[%s5 + $0x20] sm:$0xff] %vm1156, %v1018
  %1162 = vst.msk [vmem:[%s5 + $0x28] sm:$0xff] %vm1156, %v1023
  %1163 = vst.msk [vmem:[%s5 + $0x30] sm:$0xff] %vm1156, %v1028
  %1164 = vst.msk [vmem:[%s5 + $0x38] sm:$0xff] %vm1156, %v1033
  %1165 = vst.msk [vmem:[%s5 + $0x40] sm:$0xff] %vm1156, %v1038
  %1166 = vst.msk [vmem:[%s5 + $0x48] sm:$0xff] %vm1156, %v1043
  %1167 = vst.msk [vmem:[%s5 + $0x50] sm:$0xff] %vm1156, %v1048
  %1168 = vst.msk [vmem:[%s5 + $0x58] sm:$0xff] %vm1156, %v1053
  %1169 = vst.msk [vmem:[%s5 + $0x60] sm:$0xff] %vm1156, %v1058
  %1170 = vst.msk [vmem:[%s5 + $0x68] sm:$0xff] %vm1156, %v1063
  %1171 = vst.msk [vmem:[%s5 + $0x70] sm:$0xff] %vm1156, %v1068
  %1172 = vst.msk [vmem:[%s5 + $0x78] sm:$0xff] %vm1156, %v1073
  %1173 = vst.msk [vmem:[%s5 + $0x80] sm:$0xff] %vm1156, %v1078
  %1174 = vst.msk [vmem:[%s5 + $0x88] sm:$0xff] %vm1156, %v1083
  %1175 = vst.msk [vmem:[%s5 + $0x90] sm:$0xff] %vm1156, %v1088
  %1176 = vst.msk [vmem:[%s5 + $0x98] sm:$0xff] %vm1156, %v1093
  %1177 = vst.msk [vmem:[%s5 + $0xa0] sm:$0xff] %vm1156, %v1098
  %1178 = vst.msk [vmem:[%s5 + $0xa8] sm:$0xff] %vm1156, %v1103
  %1179 = vst.msk [vmem:[%s5 + $0xb0] sm:$0xff] %vm1156, %v1108
  %1180 = vst.msk [vmem:[%s5 + $0xb8] sm:$0xff] %vm1156, %v1113
  %1181 = vst.msk [vmem:[%s5 + $0xc0] sm:$0xff] %vm1156, %v1118
  %1182 = vst.msk [vmem:[%s5 + $0xc8] sm:$0xff] %vm1156, %v1123
  %1183 = vst.msk [vmem:[%s5 + $0xd0] sm:$0xff] %vm1156, %v1128
  %1184 = vst.msk [vmem:[%s5 + $0xd8] sm:$0xff] %vm1156, %v1133
  %1185 = vst.msk [vmem:[%s5 + $0xe0] sm:$0xff] %vm1156, %v1138
  %1186 = vst.msk [vmem:[%s5 + $0xe8] sm:$0xff] %vm1156, %v1143
  %1187 = vst.msk [vmem:[%s5 + $0xf0] sm:$0xff] %vm1156, %v1148
  %1188 = vst.msk [vmem:[%s5 + $0xf8] sm:$0xff] %vm1156, %v1153
  // Predicated region
  $region22: #{tpu_custom_call.1} parent=0 // pred_check
    _
  $region23: #{tpu_custom_call.1} parent=0 // pred_check_branch
    %1190 = sbr.rel (0) target = $region25
  $region24: #{tpu_custom_call.1} parent=0 // pred_region
    _
  $region25: #{tpu_custom_call.1} parent=0 // pred_fallthru
    _
  // Predicated region
  $region26: #{tpu_custom_call.1} parent=0 // pred_check
    _
  $region27: #{tpu_custom_call.1} parent=0 // pred_check_branch
    %1192 = sbr.rel (0) target = $region29
  $region28: #{tpu_custom_call.1} parent=0 // pred_region
    _
  $region29: #{tpu_custom_call.1} parent=0 // pred_fallthru
    _

</llo_original>
